<compile_context>
chip_gen: v6e
topology: v6e:2x2x1
jax: 0.10.0
libtpu: 0.0.40
codegen_flags: <defaults>
</compile_context>

<pallas_src>
import functools

import jax
import jax.numpy as jnp
from jax.experimental import pallas as pl
from jax.experimental.pallas import tpu as pltpu

# ----------------------- model hyper-parameters ---------------------------
VOCAB_SIZE = 50          # small synthetic vocab (stand-in for len(TEXT.vocab))
EMBED_DIM = 100          # embedding_dim
HIDDEN_DIM = 128         # hidden_dim
LAYER_DIM = 1            # layer_dim (single-layer LSTM, as in the module)
OUTPUT_DIM = 10          # output_dim
BATCH = 2
SEQ_LEN = 8


def _round_up(x, m):
    return (x + m - 1) // m * m


# ----------------------------- Pallas kernel ------------------------------
def lstm_net_kernel(tok_ref, gtab_ref, whh_ref, b_ref, wfc_ref, bfc_ref,
                    out_ref, gx_ref):
    """Whole LSTMNet forward in ONE invocation (grid = ()).

    tok_ref : (T, Bp)    int32 time-major tokens (batch zero-padded)
    gtab_ref: (Vp, 4H)   precomputed emb_table @ W_ih (gate order i, f, o, g),
                         vocab rows zero-padded to Vp
    whh_ref : (H, 4H)    hidden->gates weights (gate order i, f, o, g)
    b_ref   : (1, 4H)    combined bias b_ih + b_hh (permuted to i, f, o, g)
    wfc_ref : (H, Op)    final Linear weights (zero-padded cols)
    bfc_ref : (1, Op)    final Linear bias    (zero-padded)
    out_ref : (Bp, Op)   classifier output (lane-dense padded block)
    gx_ref  : (T, Bp, 4H) VMEM scratch: hoisted per-timestep input projection
    """
    T, B = tok_ref.shape
    Vp, H4 = gtab_ref.shape
    H = whh_ref.shape[0]

    # ---- Phase 1: fused embedding gather + input projection ---------------
    # one-hot(tokens) @ (emb @ W_ih): a single (T*B, Vp) x (Vp, 4H) MXU matmul
    # replaces the XLA gather + the per-step x @ W_ih work.  Exact: padded
    # vocab columns of the one-hot are all zero.
    tok = tok_ref[...]                                         # (T, B) int32
    onehot = (jax.lax.broadcasted_iota(jnp.int32, (T, B, Vp), 2)
              == tok[:, :, None]).astype(jnp.float32)          # (T, B, Vp)
    gx = jnp.dot(onehot.reshape(T * B, Vp), gtab_ref[...],
                 preferred_element_type=jnp.float32)           # (T*B, 4H)
    gx_ref[...] = (gx + b_ref[...]).reshape(T, B, H4)

    # ---- Phase 2: serial recurrence (only h @ W_hh per step) --------------
    # TODO(synk-perf): keep W_hh resident in the MXU across steps via
    # pltpu.matmul_push_rhs / matmul_acc_lhs / matmul_pop to shave the weight
    # reload latency off the serial chain (skipped: keeps kernel simple/exact).
    def step(t, carry):
        h, c = carry
        gates = gx_ref[t] + jnp.dot(h, whh_ref[...],
                                    preferred_element_type=jnp.float32)
        # Gate order is (i, f, o, g): sigmoid gates are one contiguous slice
        # and sigmoid(x) = 0.5 * tanh(0.5 * x) + 0.5 -> one EUP push per vreg.
        sig = 0.5 * jnp.tanh(0.5 * gates[:, :3 * H]) + 0.5
        i_g = sig[:, 0 * H:1 * H]
        f_g = sig[:, 1 * H:2 * H]
        o_g = sig[:, 2 * H:3 * H]
        g_g = jnp.tanh(gates[:, 3 * H:4 * H])
        c_new = f_g * c + i_g * g_g
        h_new = o_g * jnp.tanh(c_new)
        return (h_new, c_new)

    h0 = jnp.zeros((B, H), jnp.float32)
    c0 = jnp.zeros((B, H), jnp.float32)
    h_last, _ = jax.lax.fori_loop(0, T, step, (h0, c0), unroll=True)

    # ---- Phase 3: classifier on the last hidden state ----------------------
    out_ref[...] = (jnp.dot(h_last, wfc_ref[...],
                            preferred_element_type=jnp.float32)
                    + bfc_ref[...])


# ------------------- one-time parameter preparation ------------------------
def prepare_lstm_params(emb_table, w_ih, w_hh, b_gates, w_fc, b_fc):
    """Run ONCE at init (outside the per-call path).

    - permutes gate columns from PyTorch's (i, f, g, o) to (i, f, o, g)
    - fuses the embedding table with W_ih:  gathering a row of (emb @ W_ih)
      equals emb[tok] @ W_ih row-for-row
    - zero-pads vocab rows to a lane multiple and the classifier to a
      lane-dense output block
    """
    def perm_gates(w):
        i, f, g, o = jnp.split(w, 4, axis=-1)
        return jnp.concatenate([i, f, o, g], axis=-1)

    w_ih_p = perm_gates(w_ih)                       # (E, 4H)
    w_hh_p = perm_gates(w_hh)                       # (H, 4H)
    b_p = perm_gates(b_gates)                       # (1, 4H)

    gates_table = emb_table @ w_ih_p                # (V, 4H)
    V = gates_table.shape[0]
    Vp = _round_up(V, 128)
    gates_table = jnp.pad(gates_table, ((0, Vp - V), (0, 0)))

    O = w_fc.shape[1]
    Op = _round_up(O, 128)
    wfc_p = jnp.pad(w_fc, ((0, 0), (0, Op - O)))
    bfc_p = jnp.pad(b_fc, ((0, 0), (0, Op - O)))

    return (gates_table, w_hh_p, b_p, wfc_p, bfc_p)


# ------------------------------ forward ------------------------------------
@functools.partial(jax.jit, static_argnames=("out_dim",))
def lstm_net_forward(tokens, gates_table, w_hh, b_gates, wfc_p, bfc_p, *,
                     out_dim):
    """tokens: (B, T) int32 -> logits (B, out_dim) float32."""
    B, T = tokens.shape
    Vp, H4 = gates_table.shape
    H = w_hh.shape[0]
    Op = wfc_p.shape[1]

    Bp = _round_up(B, 8)                              # sublane multiple
    # Tiny per-call prep: pad batch (padded rows use token 0; their h/c are
    # garbage that never touches real rows and is sliced off below).
    tok_tm = jnp.pad(tokens, ((0, Bp - B), (0, 0))).T  # (T, Bp) int32

    cost = pl.CostEstimate(
        flops=(2 * T * Bp * Vp * H4          # fused gather/projection matmul
               + 2 * T * Bp * H * H4         # recurrence h @ W_hh
               + 2 * Bp * H * Op),           # classifier
        transcendentals=T * Bp * 5 * H,
        bytes_accessed=4 * (T * Bp + Vp * H4 + H * H4 + H4
                            + H * Op + Op + Bp * Op),
    )

    vmem_spec = pl.BlockSpec(memory_space=pltpu.MemorySpace.VMEM)
    out_p = pl.pallas_call(
        lstm_net_kernel,
        out_shape=jax.ShapeDtypeStruct((Bp, Op), jnp.float32),
        in_specs=[vmem_spec] * 6,
        out_specs=vmem_spec,
        scratch_shapes=[pltpu.VMEM((T, Bp, H4), jnp.float32)],
        cost_estimate=cost,
    )(tok_tm, gates_table, w_hh, b_gates, wfc_p, bfc_p)

    return out_p[:B, :out_dim]


# ------------------------ pure-JAX reference (check) -----------------------
def reference_forward(tokens, emb_table, w_ih, w_hh, b_gates, w_fc, b_fc):
    B, T = tokens.shape
    H = w_hh.shape[0]
    embeds = jnp.take(emb_table, tokens, axis=0)            # (B, T, E)

    def step(carry, x_t):
        h, c = carry
        gates = x_t @ w_ih + h @ w_hh + b_gates
        i = jax.nn.sigmoid(gates[:, 0 * H:1 * H])
        f = jax.nn.sigmoid(gates[:, 1 * H:2 * H])
        g = jnp.tanh(gates[:, 2 * H:3 * H])
        o = jax.nn.sigmoid(gates[:, 3 * H:4 * H])
        c = f * c + i * g
        h = o * jnp.tanh(c)
        return (h, c), None

    h0 = jnp.zeros((B, H), jnp.float32)
    c0 = jnp.zeros((B, H), jnp.float32)
    (h_last, _), _ = jax.lax.scan(step, (h0, c0),
                                  jnp.transpose(embeds, (1, 0, 2)))
    return h_last @ w_fc + b_fc


# --------------------------------- main ------------------------------------
if __name__ == "__main__":
    key = jax.random.PRNGKey(0)
    k_emb, k_ih, k_hh, k_bih, k_bhh, k_fw, k_fb, k_tok = jax.random.split(key, 8)

    # nn.Embedding: N(0, 1)
    emb_table = jax.random.normal(k_emb, (VOCAB_SIZE, EMBED_DIM), jnp.float32)

    # nn.LSTM: U(-1/sqrt(H), 1/sqrt(H)); stored input-major (the transpose of
    # PyTorch's storage), gate order i, f, g, o as in PyTorch.
    s = 1.0 / jnp.sqrt(jnp.float32(HIDDEN_DIM))
    w_ih = jax.random.uniform(k_ih, (EMBED_DIM, 4 * HIDDEN_DIM), jnp.float32, -s, s)
    w_hh = jax.random.uniform(k_hh, (HIDDEN_DIM, 4 * HIDDEN_DIM), jnp.float32, -s, s)
    b_ih = jax.random.uniform(k_bih, (1, 4 * HIDDEN_DIM), jnp.float32, -s, s)
    b_hh = jax.random.uniform(k_bhh, (1, 4 * HIDDEN_DIM), jnp.float32, -s, s)
    b_gates = b_ih + b_hh

    # nn.Linear(hidden_dim, output_dim): U(-1/sqrt(H), 1/sqrt(H))
    w_fc = jax.random.uniform(k_fw, (HIDDEN_DIM, OUTPUT_DIM), jnp.float32, -s, s)
    b_fc = jax.random.uniform(k_fb, (1, OUTPUT_DIM), jnp.float32, -s, s)

    tokens = jax.random.randint(k_tok, (BATCH, SEQ_LEN), 0, VOCAB_SIZE,
                                dtype=jnp.int32)

    # One-time (init) preparation: gate permutation, emb@W_ih fusion, padding.
    params = prepare_lstm_params(emb_table, w_ih, w_hh, b_gates, w_fc, b_fc)
    params = jax.tree_util.tree_map(jax.block_until_ready, params)

    out = lstm_net_forward(tokens, *params, out_dim=OUTPUT_DIM)
    out = jax.block_until_ready(out)

    ref = reference_forward(tokens, emb_table, w_ih, w_hh, b_gates, w_fc, b_fc)
    assert out.shape == (BATCH, OUTPUT_DIM)
    # sigmoid-via-tanh and the fused emb@W_ih precompute differ from the
    # reference only at the ~1e-6 level; 1e-4 tolerance is comfortably tight.
    assert jnp.allclose(out, ref, atol=1e-4, rtol=1e-4), (
        jnp.max(jnp.abs(out - ref)))

    print("KERNEL_OK")
</pallas_src>

<mosaic_0001>
module attributes {stable_mosaic.version = 11 : i64} {
  func.func @lstm_net_kernel(%arg0: memref<8x8xi32, #tpu.memory_space<vmem>>, %arg1: memref<128x512xf32, #tpu.memory_space<vmem>>, %arg2: memref<128x512xf32, #tpu.memory_space<vmem>>, %arg3: memref<1x512xf32, #tpu.memory_space<vmem>>, %arg4: memref<128x128xf32, #tpu.memory_space<vmem>>, %arg5: memref<1x128xf32, #tpu.memory_space<vmem>>, %arg6: memref<8x128xf32, #tpu.memory_space<vmem>>, %arg7: memref<8x8x512xf32, #tpu.memory_space<vmem>>) attributes {dimension_semantics = [], scalar_prefetch = 0 : i64, scratch_operands = 1 : i64, tpu.core_type = #tpu.core_type<tc>} {
    %c0 = arith.constant 0 : index
    %c0_0 = arith.constant 0 : index
    %0 = vector.load %arg0[%c0, %c0_0] : memref<8x8xi32, #tpu.memory_space<vmem>>, vector<8x8xi32>
    %1 = tpu.iota {dimensions = array<i32: 2>} : vector<8x8x128xi32>
    %2 = vector.shape_cast %0 : vector<8x8xi32> to vector<8x8x1xi32>
    %3 = vector.broadcast %2 : vector<8x8x1xi32> to vector<8x8x128xi32>
    %4 = arith.cmpi eq, %1, %3 : vector<8x8x128xi32>
    %5 = arith.extui %4 : vector<8x8x128xi1> to vector<8x8x128xi32>
    %6 = arith.sitofp %5 : vector<8x8x128xi32> to vector<8x8x128xf32>
    %7 = vector.shape_cast %6 : vector<8x8x128xf32> to vector<64x128xf32>
    %c0_1 = arith.constant 0 : index
    %c0_2 = arith.constant 0 : index
    %8 = vector.load %arg1[%c0_1, %c0_2] : memref<128x512xf32, #tpu.memory_space<vmem>>, vector<128x512xf32>
    %cst = arith.constant dense<0.000000e+00> : vector<64x512xf32>
    %9 = tpu.matmul %7, %8, %cst {dimension_numbers = #tpu.dot_dimension_numbers<[1], [0], [0], [1], [0, 0, 1, 1], [], []>} : vector<64x128xf32>, vector<128x512xf32>, vector<64x512xf32> -> vector<64x512xf32>
    %c0_3 = arith.constant 0 : index
    %c0_4 = arith.constant 0 : index
    %10 = vector.load %arg3[%c0_3, %c0_4] : memref<1x512xf32, #tpu.memory_space<vmem>>, vector<1x512xf32>
    %11 = vector.broadcast %10 : vector<1x512xf32> to vector<64x512xf32>
    %12 = arith.addf %9, %11 : vector<64x512xf32>
    %13 = vector.shape_cast %12 : vector<64x512xf32> to vector<8x8x512xf32>
    %c0_5 = arith.constant 0 : index
    %c0_6 = arith.constant 0 : index
    %c0_7 = arith.constant 0 : index
    %14 = vector.load %arg7[%c0_5, %c0_6, %c0_7] : memref<8x8x512xf32, #tpu.memory_space<vmem>>, vector<8x8x512xf32>
    tpu.vector_store %arg7[%c0_5, %c0_6, %c0_7], %13 {strides = array<i32>} : memref<8x8x512xf32, #tpu.memory_space<vmem>>, vector<8x8x512xf32>,
    %cst_8 = arith.constant 0.000000e+00 : f32
    %15 = vector.broadcast %cst_8 : f32 to vector<8x128xf32>
    %cst_9 = arith.constant 0.000000e+00 : f32
    %16 = vector.broadcast %cst_9 : f32 to vector<8x128xf32>
    %c0_i32 = arith.constant 0 : i32
    %17 = arith.index_cast %c0_i32 : i32 to index
    %c0_10 = arith.constant 0 : index
    %c0_11 = arith.constant 0 : index
    %18 = vector.load %arg7[%17, %c0_10, %c0_11] : memref<8x8x512xf32, #tpu.memory_space<vmem>>, vector<1x8x512xf32>
    %19 = vector.shape_cast %18 : vector<1x8x512xf32> to vector<8x512xf32>
    %c0_12 = arith.constant 0 : index
    %c0_13 = arith.constant 0 : index
    %20 = vector.load %arg2[%c0_12, %c0_13] : memref<128x512xf32, #tpu.memory_space<vmem>>, vector<128x512xf32>
    %cst_14 = arith.constant dense<0.000000e+00> : vector<8x512xf32>
    %21 = tpu.matmul %15, %20, %cst_14 {dimension_numbers = #tpu.dot_dimension_numbers<[1], [0], [0], [1], [0, 0, 1, 1], [], []>} : vector<8x128xf32>, vector<128x512xf32>, vector<8x512xf32> -> vector<8x512xf32>
    %22 = arith.addf %19, %21 : vector<8x512xf32>
    %23 = vector.extract_strided_slice %22 {offsets = [0, 0], sizes = [8, 384], strides = [1, 1]} : vector<8x512xf32> to vector<8x384xf32>
    %cst_15 = arith.constant 5.000000e-01 : f32
    %24 = vector.broadcast %cst_15 : f32 to vector<8x384xf32>
    %25 = arith.mulf %24, %23 : vector<8x384xf32>
    %26 = math.tanh %25 : vector<8x384xf32>
    %cst_16 = arith.constant 5.000000e-01 : f32
    %27 = vector.broadcast %cst_16 : f32 to vector<8x384xf32>
    %28 = arith.mulf %27, %26 : vector<8x384xf32>
    %cst_17 = arith.constant 5.000000e-01 : f32
    %29 = vector.broadcast %cst_17 : f32 to vector<8x384xf32>
    %30 = arith.addf %28, %29 : vector<8x384xf32>
    %31 = vector.extract_strided_slice %30 {offsets = [0, 0], sizes = [8, 128], strides = [1, 1]} : vector<8x384xf32> to vector<8x128xf32>
    %32 = vector.extract_strided_slice %30 {offsets = [0, 128], sizes = [8, 128], strides = [1, 1]} : vector<8x384xf32> to vector<8x128xf32>
    %33 = vector.extract_strided_slice %30 {offsets = [0, 256], sizes = [8, 128], strides = [1, 1]} : vector<8x384xf32> to vector<8x128xf32>
    %34 = vector.extract_strided_slice %22 {offsets = [0, 384], sizes = [8, 128], strides = [1, 1]} : vector<8x512xf32> to vector<8x128xf32>
    %35 = math.tanh %34 : vector<8x128xf32>
    %36 = arith.mulf %32, %16 : vector<8x128xf32>
    %37 = arith.mulf %31, %35 : vector<8x128xf32>
    %38 = arith.addf %36, %37 : vector<8x128xf32>
    %39 = math.tanh %38 : vector<8x128xf32>
    %40 = arith.mulf %33, %39 : vector<8x128xf32>
    %c1_i32 = arith.constant 1 : i32
    %41 = arith.index_cast %c1_i32 : i32 to index
    %c0_18 = arith.constant 0 : index
    %c0_19 = arith.constant 0 : index
    %42 = vector.load %arg7[%41, %c0_18, %c0_19] : memref<8x8x512xf32, #tpu.memory_space<vmem>>, vector<1x8x512xf32>
    %43 = vector.shape_cast %42 : vector<1x8x512xf32> to vector<8x512xf32>
    %c0_20 = arith.constant 0 : index
    %c0_21 = arith.constant 0 : index
    %44 = vector.load %arg2[%c0_20, %c0_21] : memref<128x512xf32, #tpu.memory_space<vmem>>, vector<128x512xf32>
    %cst_22 = arith.constant dense<0.000000e+00> : vector<8x512xf32>
    %45 = tpu.matmul %40, %44, %cst_22 {dimension_numbers = #tpu.dot_dimension_numbers<[1], [0], [0], [1], [0, 0, 1, 1], [], []>} : vector<8x128xf32>, vector<128x512xf32>, vector<8x512xf32> -> vector<8x512xf32>
    %46 = arith.addf %43, %45 : vector<8x512xf32>
    %47 = vector.extract_strided_slice %46 {offsets = [0, 0], sizes = [8, 384], strides = [1, 1]} : vector<8x512xf32> to vector<8x384xf32>
    %cst_23 = arith.constant 5.000000e-01 : f32
    %48 = vector.broadcast %cst_23 : f32 to vector<8x384xf32>
    %49 = arith.mulf %48, %47 : vector<8x384xf32>
    %50 = math.tanh %49 : vector<8x384xf32>
    %cst_24 = arith.constant 5.000000e-01 : f32
    %51 = vector.broadcast %cst_24 : f32 to vector<8x384xf32>
    %52 = arith.mulf %51, %50 : vector<8x384xf32>
    %cst_25 = arith.constant 5.000000e-01 : f32
    %53 = vector.broadcast %cst_25 : f32 to vector<8x384xf32>
    %54 = arith.addf %52, %53 : vector<8x384xf32>
    %55 = vector.extract_strided_slice %54 {offsets = [0, 0], sizes = [8, 128], strides = [1, 1]} : vector<8x384xf32> to vector<8x128xf32>
    %56 = vector.extract_strided_slice %54 {offsets = [0, 128], sizes = [8, 128], strides = [1, 1]} : vector<8x384xf32> to vector<8x128xf32>
    %57 = vector.extract_strided_slice %54 {offsets = [0, 256], sizes = [8, 128], strides = [1, 1]} : vector<8x384xf32> to vector<8x128xf32>
    %58 = vector.extract_strided_slice %46 {offsets = [0, 384], sizes = [8, 128], strides = [1, 1]} : vector<8x512xf32> to vector<8x128xf32>
    %59 = math.tanh %58 : vector<8x128xf32>
    %60 = arith.mulf %56, %38 : vector<8x128xf32>
    %61 = arith.mulf %55, %59 : vector<8x128xf32>
    %62 = arith.addf %60, %61 : vector<8x128xf32>
    %63 = math.tanh %62 : vector<8x128xf32>
    %64 = arith.mulf %57, %63 : vector<8x128xf32>
    %c2_i32 = arith.constant 2 : i32
    %65 = arith.index_cast %c2_i32 : i32 to index
    %c0_26 = arith.constant 0 : index
    %c0_27 = arith.constant 0 : index
    %66 = vector.load %arg7[%65, %c0_26, %c0_27] : memref<8x8x512xf32, #tpu.memory_space<vmem>>, vector<1x8x512xf32>
    %67 = vector.shape_cast %66 : vector<1x8x512xf32> to vector<8x512xf32>
    %c0_28 = arith.constant 0 : index
    %c0_29 = arith.constant 0 : index
    %68 = vector.load %arg2[%c0_28, %c0_29] : memref<128x512xf32, #tpu.memory_space<vmem>>, vector<128x512xf32>
    %cst_30 = arith.constant dense<0.000000e+00> : vector<8x512xf32>
    %69 = tpu.matmul %64, %68, %cst_30 {dimension_numbers = #tpu.dot_dimension_numbers<[1], [0], [0], [1], [0, 0, 1, 1], [], []>} : vector<8x128xf32>, vector<128x512xf32>, vector<8x512xf32> -> vector<8x512xf32>
    %70 = arith.addf %67, %69 : vector<8x512xf32>
    %71 = vector.extract_strided_slice %70 {offsets = [0, 0], sizes = [8, 384], strides = [1, 1]} : vector<8x512xf32> to vector<8x384xf32>
    %cst_31 = arith.constant 5.000000e-01 : f32
    %72 = vector.broadcast %cst_31 : f32 to vector<8x384xf32>
    %73 = arith.mulf %72, %71 : vector<8x384xf32>
    %74 = math.tanh %73 : vector<8x384xf32>
    %cst_32 = arith.constant 5.000000e-01 : f32
    %75 = vector.broadcast %cst_32 : f32 to vector<8x384xf32>
    %76 = arith.mulf %75, %74 : vector<8x384xf32>
    %cst_33 = arith.constant 5.000000e-01 : f32
    %77 = vector.broadcast %cst_33 : f32 to vector<8x384xf32>
    %78 = arith.addf %76, %77 : vector<8x384xf32>
    %79 = vector.extract_strided_slice %78 {offsets = [0, 0], sizes = [8, 128], strides = [1, 1]} : vector<8x384xf32> to vector<8x128xf32>
    %80 = vector.extract_strided_slice %78 {offsets = [0, 128], sizes = [8, 128], strides = [1, 1]} : vector<8x384xf32> to vector<8x128xf32>
    %81 = vector.extract_strided_slice %78 {offsets = [0, 256], sizes = [8, 128], strides = [1, 1]} : vector<8x384xf32> to vector<8x128xf32>
    %82 = vector.extract_strided_slice %70 {offsets = [0, 384], sizes = [8, 128], strides = [1, 1]} : vector<8x512xf32> to vector<8x128xf32>
    %83 = math.tanh %82 : vector<8x128xf32>
    %84 = arith.mulf %80, %62 : vector<8x128xf32>
    %85 = arith.mulf %79, %83 : vector<8x128xf32>
    %86 = arith.addf %84, %85 : vector<8x128xf32>
    %87 = math.tanh %86 : vector<8x128xf32>
    %88 = arith.mulf %81, %87 : vector<8x128xf32>
    %c3_i32 = arith.constant 3 : i32
    %89 = arith.index_cast %c3_i32 : i32 to index
    %c0_34 = arith.constant 0 : index
    %c0_35 = arith.constant 0 : index
    %90 = vector.load %arg7[%89, %c0_34, %c0_35] : memref<8x8x512xf32, #tpu.memory_space<vmem>>, vector<1x8x512xf32>
    %91 = vector.shape_cast %90 : vector<1x8x512xf32> to vector<8x512xf32>
    %c0_36 = arith.constant 0 : index
    %c0_37 = arith.constant 0 : index
    %92 = vector.load %arg2[%c0_36, %c0_37] : memref<128x512xf32, #tpu.memory_space<vmem>>, vector<128x512xf32>
    %cst_38 = arith.constant dense<0.000000e+00> : vector<8x512xf32>
    %93 = tpu.matmul %88, %92, %cst_38 {dimension_numbers = #tpu.dot_dimension_numbers<[1], [0], [0], [1], [0, 0, 1, 1], [], []>} : vector<8x128xf32>, vector<128x512xf32>, vector<8x512xf32> -> vector<8x512xf32>
    %94 = arith.addf %91, %93 : vector<8x512xf32>
    %95 = vector.extract_strided_slice %94 {offsets = [0, 0], sizes = [8, 384], strides = [1, 1]} : vector<8x512xf32> to vector<8x384xf32>
    %cst_39 = arith.constant 5.000000e-01 : f32
    %96 = vector.broadcast %cst_39 : f32 to vector<8x384xf32>
    %97 = arith.mulf %96, %95 : vector<8x384xf32>
    %98 = math.tanh %97 : vector<8x384xf32>
    %cst_40 = arith.constant 5.000000e-01 : f32
    %99 = vector.broadcast %cst_40 : f32 to vector<8x384xf32>
    %100 = arith.mulf %99, %98 : vector<8x384xf32>
    %cst_41 = arith.constant 5.000000e-01 : f32
    %101 = vector.broadcast %cst_41 : f32 to vector<8x384xf32>
    %102 = arith.addf %100, %101 : vector<8x384xf32>
    %103 = vector.extract_strided_slice %102 {offsets = [0, 0], sizes = [8, 128], strides = [1, 1]} : vector<8x384xf32> to vector<8x128xf32>
    %104 = vector.extract_strided_slice %102 {offsets = [0, 128], sizes = [8, 128], strides = [1, 1]} : vector<8x384xf32> to vector<8x128xf32>
    %105 = vector.extract_strided_slice %102 {offsets = [0, 256], sizes = [8, 128], strides = [1, 1]} : vector<8x384xf32> to vector<8x128xf32>
    %106 = vector.extract_strided_slice %94 {offsets = [0, 384], sizes = [8, 128], strides = [1, 1]} : vector<8x512xf32> to vector<8x128xf32>
    %107 = math.tanh %106 : vector<8x128xf32>
    %108 = arith.mulf %104, %86 : vector<8x128xf32>
    %109 = arith.mulf %103, %107 : vector<8x128xf32>
    %110 = arith.addf %108, %109 : vector<8x128xf32>
    %111 = math.tanh %110 : vector<8x128xf32>
    %112 = arith.mulf %105, %111 : vector<8x128xf32>
    %c4_i32 = arith.constant 4 : i32
    %113 = arith.index_cast %c4_i32 : i32 to index
    %c0_42 = arith.constant 0 : index
    %c0_43 = arith.constant 0 : index
    %114 = vector.load %arg7[%113, %c0_42, %c0_43] : memref<8x8x512xf32, #tpu.memory_space<vmem>>, vector<1x8x512xf32>
    %115 = vector.shape_cast %114 : vector<1x8x512xf32> to vector<8x512xf32>
    %c0_44 = arith.constant 0 : index
    %c0_45 = arith.constant 0 : index
    %116 = vector.load %arg2[%c0_44, %c0_45] : memref<128x512xf32, #tpu.memory_space<vmem>>, vector<128x512xf32>
    %cst_46 = arith.constant dense<0.000000e+00> : vector<8x512xf32>
    %117 = tpu.matmul %112, %116, %cst_46 {dimension_numbers = #tpu.dot_dimension_numbers<[1], [0], [0], [1], [0, 0, 1, 1], [], []>} : vector<8x128xf32>, vector<128x512xf32>, vector<8x512xf32> -> vector<8x512xf32>
    %118 = arith.addf %115, %117 : vector<8x512xf32>
    %119 = vector.extract_strided_slice %118 {offsets = [0, 0], sizes = [8, 384], strides = [1, 1]} : vector<8x512xf32> to vector<8x384xf32>
    %cst_47 = arith.constant 5.000000e-01 : f32
    %120 = vector.broadcast %cst_47 : f32 to vector<8x384xf32>
    %121 = arith.mulf %120, %119 : vector<8x384xf32>
    %122 = math.tanh %121 : vector<8x384xf32>
    %cst_48 = arith.constant 5.000000e-01 : f32
    %123 = vector.broadcast %cst_48 : f32 to vector<8x384xf32>
    %124 = arith.mulf %123, %122 : vector<8x384xf32>
    %cst_49 = arith.constant 5.000000e-01 : f32
    %125 = vector.broadcast %cst_49 : f32 to vector<8x384xf32>
    %126 = arith.addf %124, %125 : vector<8x384xf32>
    %127 = vector.extract_strided_slice %126 {offsets = [0, 0], sizes = [8, 128], strides = [1, 1]} : vector<8x384xf32> to vector<8x128xf32>
    %128 = vector.extract_strided_slice %126 {offsets = [0, 128], sizes = [8, 128], strides = [1, 1]} : vector<8x384xf32> to vector<8x128xf32>
    %129 = vector.extract_strided_slice %126 {offsets = [0, 256], sizes = [8, 128], strides = [1, 1]} : vector<8x384xf32> to vector<8x128xf32>
    %130 = vector.extract_strided_slice %118 {offsets = [0, 384], sizes = [8, 128], strides = [1, 1]} : vector<8x512xf32> to vector<8x128xf32>
    %131 = math.tanh %130 : vector<8x128xf32>
    %132 = arith.mulf %128, %110 : vector<8x128xf32>
    %133 = arith.mulf %127, %131 : vector<8x128xf32>
    %134 = arith.addf %132, %133 : vector<8x128xf32>
    %135 = math.tanh %134 : vector<8x128xf32>
    %136 = arith.mulf %129, %135 : vector<8x128xf32>
    %c5_i32 = arith.constant 5 : i32
    %137 = arith.index_cast %c5_i32 : i32 to index
    %c0_50 = arith.constant 0 : index
    %c0_51 = arith.constant 0 : index
    %138 = vector.load %arg7[%137, %c0_50, %c0_51] : memref<8x8x512xf32, #tpu.memory_space<vmem>>, vector<1x8x512xf32>
    %139 = vector.shape_cast %138 : vector<1x8x512xf32> to vector<8x512xf32>
    %c0_52 = arith.constant 0 : index
    %c0_53 = arith.constant 0 : index
    %140 = vector.load %arg2[%c0_52, %c0_53] : memref<128x512xf32, #tpu.memory_space<vmem>>, vector<128x512xf32>
    %cst_54 = arith.constant dense<0.000000e+00> : vector<8x512xf32>
    %141 = tpu.matmul %136, %140, %cst_54 {dimension_numbers = #tpu.dot_dimension_numbers<[1], [0], [0], [1], [0, 0, 1, 1], [], []>} : vector<8x128xf32>, vector<128x512xf32>, vector<8x512xf32> -> vector<8x512xf32>
    %142 = arith.addf %139, %141 : vector<8x512xf32>
    %143 = vector.extract_strided_slice %142 {offsets = [0, 0], sizes = [8, 384], strides = [1, 1]} : vector<8x512xf32> to vector<8x384xf32>
    %cst_55 = arith.constant 5.000000e-01 : f32
    %144 = vector.broadcast %cst_55 : f32 to vector<8x384xf32>
    %145 = arith.mulf %144, %143 : vector<8x384xf32>
    %146 = math.tanh %145 : vector<8x384xf32>
    %cst_56 = arith.constant 5.000000e-01 : f32
    %147 = vector.broadcast %cst_56 : f32 to vector<8x384xf32>
    %148 = arith.mulf %147, %146 : vector<8x384xf32>
    %cst_57 = arith.constant 5.000000e-01 : f32
    %149 = vector.broadcast %cst_57 : f32 to vector<8x384xf32>
    %150 = arith.addf %148, %149 : vector<8x384xf32>
    %151 = vector.extract_strided_slice %150 {offsets = [0, 0], sizes = [8, 128], strides = [1, 1]} : vector<8x384xf32> to vector<8x128xf32>
    %152 = vector.extract_strided_slice %150 {offsets = [0, 128], sizes = [8, 128], strides = [1, 1]} : vector<8x384xf32> to vector<8x128xf32>
    %153 = vector.extract_strided_slice %150 {offsets = [0, 256], sizes = [8, 128], strides = [1, 1]} : vector<8x384xf32> to vector<8x128xf32>
    %154 = vector.extract_strided_slice %142 {offsets = [0, 384], sizes = [8, 128], strides = [1, 1]} : vector<8x512xf32> to vector<8x128xf32>
    %155 = math.tanh %154 : vector<8x128xf32>
    %156 = arith.mulf %152, %134 : vector<8x128xf32>
    %157 = arith.mulf %151, %155 : vector<8x128xf32>
    %158 = arith.addf %156, %157 : vector<8x128xf32>
    %159 = math.tanh %158 : vector<8x128xf32>
    %160 = arith.mulf %153, %159 : vector<8x128xf32>
    %c6_i32 = arith.constant 6 : i32
    %161 = arith.index_cast %c6_i32 : i32 to index
    %c0_58 = arith.constant 0 : index
    %c0_59 = arith.constant 0 : index
    %162 = vector.load %arg7[%161, %c0_58, %c0_59] : memref<8x8x512xf32, #tpu.memory_space<vmem>>, vector<1x8x512xf32>
    %163 = vector.shape_cast %162 : vector<1x8x512xf32> to vector<8x512xf32>
    %c0_60 = arith.constant 0 : index
    %c0_61 = arith.constant 0 : index
    %164 = vector.load %arg2[%c0_60, %c0_61] : memref<128x512xf32, #tpu.memory_space<vmem>>, vector<128x512xf32>
    %cst_62 = arith.constant dense<0.000000e+00> : vector<8x512xf32>
    %165 = tpu.matmul %160, %164, %cst_62 {dimension_numbers = #tpu.dot_dimension_numbers<[1], [0], [0], [1], [0, 0, 1, 1], [], []>} : vector<8x128xf32>, vector<128x512xf32>, vector<8x512xf32> -> vector<8x512xf32>
    %166 = arith.addf %163, %165 : vector<8x512xf32>
    %167 = vector.extract_strided_slice %166 {offsets = [0, 0], sizes = [8, 384], strides = [1, 1]} : vector<8x512xf32> to vector<8x384xf32>
    %cst_63 = arith.constant 5.000000e-01 : f32
    %168 = vector.broadcast %cst_63 : f32 to vector<8x384xf32>
    %169 = arith.mulf %168, %167 : vector<8x384xf32>
    %170 = math.tanh %169 : vector<8x384xf32>
    %cst_64 = arith.constant 5.000000e-01 : f32
    %171 = vector.broadcast %cst_64 : f32 to vector<8x384xf32>
    %172 = arith.mulf %171, %170 : vector<8x384xf32>
    %cst_65 = arith.constant 5.000000e-01 : f32
    %173 = vector.broadcast %cst_65 : f32 to vector<8x384xf32>
    %174 = arith.addf %172, %173 : vector<8x384xf32>
    %175 = vector.extract_strided_slice %174 {offsets = [0, 0], sizes = [8, 128], strides = [1, 1]} : vector<8x384xf32> to vector<8x128xf32>
    %176 = vector.extract_strided_slice %174 {offsets = [0, 128], sizes = [8, 128], strides = [1, 1]} : vector<8x384xf32> to vector<8x128xf32>
    %177 = vector.extract_strided_slice %174 {offsets = [0, 256], sizes = [8, 128], strides = [1, 1]} : vector<8x384xf32> to vector<8x128xf32>
    %178 = vector.extract_strided_slice %166 {offsets = [0, 384], sizes = [8, 128], strides = [1, 1]} : vector<8x512xf32> to vector<8x128xf32>
    %179 = math.tanh %178 : vector<8x128xf32>
    %180 = arith.mulf %176, %158 : vector<8x128xf32>
    %181 = arith.mulf %175, %179 : vector<8x128xf32>
    %182 = arith.addf %180, %181 : vector<8x128xf32>
    %183 = math.tanh %182 : vector<8x128xf32>
    %184 = arith.mulf %177, %183 : vector<8x128xf32>
    %c7_i32 = arith.constant 7 : i32
    %185 = arith.index_cast %c7_i32 : i32 to index
    %c0_66 = arith.constant 0 : index
    %c0_67 = arith.constant 0 : index
    %186 = vector.load %arg7[%185, %c0_66, %c0_67] : memref<8x8x512xf32, #tpu.memory_space<vmem>>, vector<1x8x512xf32>
    %187 = vector.shape_cast %186 : vector<1x8x512xf32> to vector<8x512xf32>
    %c0_68 = arith.constant 0 : index
    %c0_69 = arith.constant 0 : index
    %188 = vector.load %arg2[%c0_68, %c0_69] : memref<128x512xf32, #tpu.memory_space<vmem>>, vector<128x512xf32>
    %cst_70 = arith.constant dense<0.000000e+00> : vector<8x512xf32>
    %189 = tpu.matmul %184, %188, %cst_70 {dimension_numbers = #tpu.dot_dimension_numbers<[1], [0], [0], [1], [0, 0, 1, 1], [], []>} : vector<8x128xf32>, vector<128x512xf32>, vector<8x512xf32> -> vector<8x512xf32>
    %190 = arith.addf %187, %189 : vector<8x512xf32>
    %191 = vector.extract_strided_slice %190 {offsets = [0, 0], sizes = [8, 384], strides = [1, 1]} : vector<8x512xf32> to vector<8x384xf32>
    %cst_71 = arith.constant 5.000000e-01 : f32
    %192 = vector.broadcast %cst_71 : f32 to vector<8x384xf32>
    %193 = arith.mulf %192, %191 : vector<8x384xf32>
    %194 = math.tanh %193 : vector<8x384xf32>
    %cst_72 = arith.constant 5.000000e-01 : f32
    %195 = vector.broadcast %cst_72 : f32 to vector<8x384xf32>
    %196 = arith.mulf %195, %194 : vector<8x384xf32>
    %cst_73 = arith.constant 5.000000e-01 : f32
    %197 = vector.broadcast %cst_73 : f32 to vector<8x384xf32>
    %198 = arith.addf %196, %197 : vector<8x384xf32>
    %199 = vector.extract_strided_slice %198 {offsets = [0, 0], sizes = [8, 128], strides = [1, 1]} : vector<8x384xf32> to vector<8x128xf32>
    %200 = vector.extract_strided_slice %198 {offsets = [0, 128], sizes = [8, 128], strides = [1, 1]} : vector<8x384xf32> to vector<8x128xf32>
    %201 = vector.extract_strided_slice %198 {offsets = [0, 256], sizes = [8, 128], strides = [1, 1]} : vector<8x384xf32> to vector<8x128xf32>
    %202 = vector.extract_strided_slice %190 {offsets = [0, 384], sizes = [8, 128], strides = [1, 1]} : vector<8x512xf32> to vector<8x128xf32>
    %203 = math.tanh %202 : vector<8x128xf32>
    %204 = arith.mulf %200, %182 : vector<8x128xf32>
    %205 = arith.mulf %199, %203 : vector<8x128xf32>
    %206 = arith.addf %204, %205 : vector<8x128xf32>
    %207 = math.tanh %206 : vector<8x128xf32>
    %208 = arith.mulf %201, %207 : vector<8x128xf32>
    %c8_i32 = arith.constant 8 : i32
    %c0_74 = arith.constant 0 : index
    %c0_75 = arith.constant 0 : index
    %209 = vector.load %arg4[%c0_74, %c0_75] : memref<128x128xf32, #tpu.memory_space<vmem>>, vector<128x128xf32>
    %cst_76 = arith.constant dense<0.000000e+00> : vector<8x128xf32>
    %210 = tpu.matmul %208, %209, %cst_76 {dimension_numbers = #tpu.dot_dimension_numbers<[1], [0], [0], [1], [0, 0, 1, 1], [], []>} : vector<8x128xf32>, vector<128x128xf32>, vector<8x128xf32> -> vector<8x128xf32>
    %c0_77 = arith.constant 0 : index
    %c0_78 = arith.constant 0 : index
    %211 = vector.load %arg5[%c0_77, %c0_78] : memref<1x128xf32, #tpu.memory_space<vmem>>, vector<1x128xf32>
    %212 = vector.broadcast %211 : vector<1x128xf32> to vector<8x128xf32>
    %213 = arith.addf %210, %212 : vector<8x128xf32>
    %c0_79 = arith.constant 0 : index
    %c0_80 = arith.constant 0 : index
    %214 = vector.load %arg6[%c0_79, %c0_80] : memref<8x128xf32, #tpu.memory_space<vmem>>, vector<8x128xf32>
    tpu.vector_store %arg6[%c0_79, %c0_80], %213 {strides = array<i32>} : memref<8x128xf32, #tpu.memory_space<vmem>>, vector<8x128xf32>,
    return
  }
}

</mosaic_0001>

<llo_original>
// kernel: lstm_net_forward.1
$region0: #{lstm_net_forward.1}
  #allocation0 [shape = 'u32[]', space=smem, size = 0x4, offset = 0x4, fixed_abs, tag = 'smem constant byte address 0x4 - core index']
  #allocation1 [shape = 'u32[144,128]{1,0:T(1,128)}', space=vmem, size = 0x12000, scoped, tag = 'internal scratch']
  #allocation2 [shape = 'f32[8,8,512]{2,1,0:T(8,128)}', space=vmem, size = 0x20000, scoped, tag = 'scratch operand']
  %s0 = inlined_call_operand.vmem [shape: s32[8,8], index: 0, kind: input, shape index: {}]
  %s1 = inlined_call_operand.hbm [shape: f32[128,512], index: 1, kind: input, shape index: {}]
  %s2 = inlined_call_operand.hbm [shape: f32[128,512], index: 2, kind: input, shape index: {}]
  %s3 = inlined_call_operand.vmem [shape: f32[1,512], index: 3, kind: input, shape index: {}]
  %s4 = inlined_call_operand.hbm [shape: f32[128,128], index: 4, kind: input, shape index: {}]
  %s5 = inlined_call_operand.vmem [shape: f32[1,128], index: 5, kind: input, shape index: {}]
  %s6 = inlined_call_operand.vmem [shape: f32[8,128], index: 6, kind: output, shape index: {}]
  %s7 = sld [smem:[#allocation0]]
  $region46: #{lstm_net_forward.1} parent=0
    _
  %s9 = ssub.s32 1, %s7
  %s10 = scalar_select 0, %s9, %s7
  $region1: #{lstm_net_forward.1} parent=0
    #allocation3 [shape = 'u8[262144]{0}', space=vmem, size = 0x40000, scoped, tag = 'input window, operand 1, single buffered']
    #allocation4 [shape = 's32[1]{0}', space=sflag, size = 0x4, scoped, tag = 'scoped memory for lstm_net_forward.1']
    #allocation5 [shape = 'u8[262144]{0}', space=vmem, size = 0x40000, scoped, tag = 'input window, operand 2, single buffered']
    #allocation6 [shape = 's32[1]{0}', space=sflag, size = 0x4, scoped, tag = 'scoped memory for lstm_net_forward.1']
    #allocation7 [shape = 'u8[65536]{0}', space=vmem, size = 0x10000, scoped, tag = 'input window, operand 4, single buffered']
    %11 = vsyncpa [#allocation4], 0
    %12 = vsyncpa [#allocation6], 0
    // Predicated region
    $region2: #{lstm_net_forward.1} parent=1 // pred_check
      _
    $region3: #{lstm_net_forward.1} parent=1 // pred_check_branch
      %14 = sbr.rel (0) target = $region5
    $region4: #{lstm_net_forward.1} parent=1 // pred_region
      _
    $region5: #{lstm_net_forward.1} parent=1 // pred_fallthru
      _
    // Predicated region
    $region6: #{lstm_net_forward.1} parent=1 // pred_check
      _
    $region7: #{lstm_net_forward.1} parent=1 // pred_check_branch
      %16 = sbr.rel (0) target = $region9
    $region8: #{lstm_net_forward.1} parent=1 // pred_region
      %s18 = ssub.s32 8192, 8192
      %19 = vsyncadd [#allocation4], %s18
      %s20 = sshll.u32 [#allocation3], 4
      %s21 = int_to_ptr.vmem [resolvable:$true] %s20
      %26 = dma.hbm_to_vmem [thread:$0]  %s1, 8192, %s21, [#allocation4], 512, 512, 32
    $region9: #{lstm_net_forward.1} parent=1 // pred_fallthru
      _
    // Predicated region
    $region10: #{lstm_net_forward.1} parent=1 // pred_check
      _
    $region11: #{lstm_net_forward.1} parent=1 // pred_check_branch
      %28 = sbr.rel (0) target = $region13
    $region12: #{lstm_net_forward.1} parent=1 // pred_region
      %s30 = ssub.s32 8192, 8192
      %31 = vsyncadd [#allocation6], %s30
      %s32 = sshll.u32 [#allocation5], 4
      %s33 = int_to_ptr.vmem [resolvable:$true] %s32
      %38 = dma.hbm_to_vmem [thread:$0]  %s2, 8192, %s33, [#allocation6], 512, 512, 32
    $region13: #{lstm_net_forward.1} parent=1 // pred_fallthru
      _
    // Predicated region
    $region14: #{lstm_net_forward.1} parent=1 // pred_check
      _
    $region15: #{lstm_net_forward.1} parent=1 // pred_check_branch
      %40 = sbr.rel (0) target = $region17
    $region16: #{lstm_net_forward.1} parent=1 // pred_region
      _
    $region17: #{lstm_net_forward.1} parent=1 // pred_fallthru
      _
    // Predicated region
    $region18: #{lstm_net_forward.1} parent=1 // pred_check
      _
    $region19: #{lstm_net_forward.1} parent=1 // pred_check_branch
      %42 = sbr.rel (0) target = $region21
    $region20: #{lstm_net_forward.1} parent=1 // pred_region
      %s44 = ssub.s32 2048, 2048
      %45 = vsyncadd [#allocation6], %s44
      %s46 = sshll.u32 [#allocation7], 4
      %s47 = int_to_ptr.vmem [resolvable:$true] %s46
      %52 = dma.hbm_to_vmem [thread:$0]  %s4, 2048, %s47, [#allocation6], 128, 128, 8
    $region21: #{lstm_net_forward.1} parent=1 // pred_fallthru
      _
    // Predicated region
    $region22: #{lstm_net_forward.1} parent=1 // pred_check
      _
    $region23: #{lstm_net_forward.1} parent=1 // pred_check_branch
      %54 = sbr.rel (0) target = $region25
    $region24: #{lstm_net_forward.1} parent=1 // pred_region
      _
    $region25: #{lstm_net_forward.1} parent=1 // pred_fallthru
      _
    // Predicated region
    $region26: #{lstm_net_forward.1} parent=1 // pred_check
      _
    $region27: #{lstm_net_forward.1} parent=1 // pred_check_branch
      %56 = sbr.rel (0) target = $region29
    $region28: #{lstm_net_forward.1} parent=1 // pred_region
      %57 = dma.done [#allocation4], 8192
    $region29: #{lstm_net_forward.1} parent=1 // pred_fallthru
      _
    // Predicated region
    $region30: #{lstm_net_forward.1} parent=1 // pred_check
      _
    $region31: #{lstm_net_forward.1} parent=1 // pred_check_branch
      %59 = sbr.rel (0) target = $region33
    $region32: #{lstm_net_forward.1} parent=1 // pred_region
      %60 = dma.done [#allocation6], 8192
    $region33: #{lstm_net_forward.1} parent=1 // pred_fallthru
      _
    // Predicated region
    $region34: #{lstm_net_forward.1} parent=1 // pred_check
      _
    $region35: #{lstm_net_forward.1} parent=1 // pred_check_branch
      %62 = sbr.rel (0) target = $region37
    $region36: #{lstm_net_forward.1} parent=1 // pred_region
      %63 = dma.done [#allocation6], 2048
    $region37: #{lstm_net_forward.1} parent=1 // pred_fallthru
      _
    %v64 = vld [vmem:[%s0] sm:$0xff]
    %v65 = vlaneseq
    %v66 = vand.u32 %v65, 127
    %v67 = vlaneseq
    %v68 = vshrl.u32 %v67, 7
    %v69 = vsub.s32 0, %v68
    %v70 = vrot.slane %v64, %v69
    %72 = vbcast.lane.b32.xlu0 %v70, 256
    %v73 = vpop.permute.xlu0 %72
    %v74 = vlaneseq
    %v75 = vshrl.u32 %v74, 7
    %v76 = vsub.s32 1, %v75
    %v77 = vrot.slane %v64, %v76
    %79 = vbcast.lane.b32.xlu0 %v77, 256
    %v80 = vpop.permute.xlu0 %79
    %v81 = vlaneseq
    %v82 = vshrl.u32 %v81, 7
    %v83 = vsub.s32 2, %v82
    %v84 = vrot.slane %v64, %v83
    %86 = vbcast.lane.b32.xlu0 %v84, 256
    %v87 = vpop.permute.xlu0 %86
    %v88 = vlaneseq
    %v89 = vshrl.u32 %v88, 7
    %v90 = vsub.s32 3, %v89
    %v91 = vrot.slane %v64, %v90
    %93 = vbcast.lane.b32.xlu0 %v91, 256
    %v94 = vpop.permute.xlu0 %93
    %v95 = vlaneseq
    %v96 = vshrl.u32 %v95, 7
    %v97 = vsub.s32 4, %v96
    %v98 = vrot.slane %v64, %v97
    %100 = vbcast.lane.b32.xlu0 %v98, 256
    %v101 = vpop.permute.xlu0 %100
    %v102 = vlaneseq
    %v103 = vshrl.u32 %v102, 7
    %v104 = vsub.s32 5, %v103
    %v105 = vrot.slane %v64, %v104
    %107 = vbcast.lane.b32.xlu0 %v105, 256
    %v108 = vpop.permute.xlu0 %107
    %v109 = vlaneseq
    %v110 = vshrl.u32 %v109, 7
    %v111 = vsub.s32 6, %v110
    %v112 = vrot.slane %v64, %v111
    %114 = vbcast.lane.b32.xlu0 %v112, 256
    %v115 = vpop.permute.xlu0 %114
    %v116 = vlaneseq
    %v117 = vshrl.u32 %v116, 7
    %v118 = vsub.s32 7, %v117
    %v119 = vrot.slane %v64, %v118
    %121 = vbcast.lane.b32.xlu0 %v119, 256
    %v122 = vpop.permute.xlu0 %121
    %vm123 = vcmp.eq.s32.totalorder %v66, %v73
    %vm124 = vcmp.eq.s32.totalorder %v66, %v80
    %vm125 = vcmp.eq.s32.totalorder %v66, %v87
    %vm126 = vcmp.eq.s32.totalorder %v66, %v94
    %vm127 = vcmp.eq.s32.totalorder %v66, %v101
    %vm128 = vcmp.eq.s32.totalorder %v66, %v108
    %vm129 = vcmp.eq.s32.totalorder %v66, %v115
    %vm130 = vcmp.eq.s32.totalorder %v66, %v122
    %v131 = vsel %vm123, 1, 0
    %v132 = vsel %vm124, 1, 0
    %v133 = vsel %vm125, 1, 0
    %v134 = vsel %vm126, 1, 0
    %v135 = vsel %vm127, 1, 0
    %v136 = vsel %vm128, 1, 0
    %v137 = vsel %vm129, 1, 0
    %v138 = vsel %vm130, 1, 0
    %v139 = vcvt.s32.f32 %v131
    %v140 = vcvt.s32.f32 %v132
    %v141 = vcvt.s32.f32 %v133
    %v142 = vcvt.s32.f32 %v134
    %v143 = vcvt.s32.f32 %v135
    %v144 = vcvt.s32.f32 %v136
    %v145 = vcvt.s32.f32 %v137
    %v146 = vcvt.s32.f32 %v138
    %v147 = vld [vmem:[#allocation3] sm:$0xff]
    %v148 = vld [vmem:[#allocation3 + $0x8] sm:$0xff]
    %v149 = vld [vmem:[#allocation3 + $0x10] sm:$0xff]
    %v150 = vld [vmem:[#allocation3 + $0x18] sm:$0xff]
    %v151 = vld [vmem:[#allocation3 + $0x20] sm:$0xff]
    %v152 = vld [vmem:[#allocation3 + $0x28] sm:$0xff]
    %v153 = vld [vmem:[#allocation3 + $0x30] sm:$0xff]
    %v154 = vld [vmem:[#allocation3 + $0x38] sm:$0xff]
    %v155 = vld [vmem:[#allocation3 + $0x40] sm:$0xff]
    %v156 = vld [vmem:[#allocation3 + $0x48] sm:$0xff]
    %v157 = vld [vmem:[#allocation3 + $0x50] sm:$0xff]
    %v158 = vld [vmem:[#allocation3 + $0x58] sm:$0xff]
    %v159 = vld [vmem:[#allocation3 + $0x60] sm:$0xff]
    %v160 = vld [vmem:[#allocation3 + $0x68] sm:$0xff]
    %v161 = vld [vmem:[#allocation3 + $0x70] sm:$0xff]
    %v162 = vld [vmem:[#allocation3 + $0x78] sm:$0xff]
    %v163 = vld [vmem:[#allocation3 + $0x80] sm:$0xff]
    %v164 = vld [vmem:[#allocation3 + $0x88] sm:$0xff]
    %v165 = vld [vmem:[#allocation3 + $0x90] sm:$0xff]
    %v166 = vld [vmem:[#allocation3 + $0x98] sm:$0xff]
    %v167 = vld [vmem:[#allocation3 + $0xa0] sm:$0xff]
    %v168 = vld [vmem:[#allocation3 + $0xa8] sm:$0xff]
    %v169 = vld [vmem:[#allocation3 + $0xb0] sm:$0xff]
    %v170 = vld [vmem:[#allocation3 + $0xb8] sm:$0xff]
    %v171 = vld [vmem:[#allocation3 + $0xc0] sm:$0xff]
    %v172 = vld [vmem:[#allocation3 + $0xc8] sm:$0xff]
    %v173 = vld [vmem:[#allocation3 + $0xd0] sm:$0xff]
    %v174 = vld [vmem:[#allocation3 + $0xd8] sm:$0xff]
    %v175 = vld [vmem:[#allocation3 + $0xe0] sm:$0xff]
    %v176 = vld [vmem:[#allocation3 + $0xe8] sm:$0xff]
    %v177 = vld [vmem:[#allocation3 + $0xf0] sm:$0xff]
    %v178 = vld [vmem:[#allocation3 + $0xf8] sm:$0xff]
    %v179 = vld [vmem:[#allocation3 + $0x100] sm:$0xff]
    %v180 = vld [vmem:[#allocation3 + $0x108] sm:$0xff]
    %v181 = vld [vmem:[#allocation3 + $0x110] sm:$0xff]
    %v182 = vld [vmem:[#allocation3 + $0x118] sm:$0xff]
    %v183 = vld [vmem:[#allocation3 + $0x120] sm:$0xff]
    %v184 = vld [vmem:[#allocation3 + $0x128] sm:$0xff]
    %v185 = vld [vmem:[#allocation3 + $0x130] sm:$0xff]
    %v186 = vld [vmem:[#allocation3 + $0x138] sm:$0xff]
    %v187 = vld [vmem:[#allocation3 + $0x140] sm:$0xff]
    %v188 = vld [vmem:[#allocation3 + $0x148] sm:$0xff]
    %v189 = vld [vmem:[#allocation3 + $0x150] sm:$0xff]
    %v190 = vld [vmem:[#allocation3 + $0x158] sm:$0xff]
    %v191 = vld [vmem:[#allocation3 + $0x160] sm:$0xff]
    %v192 = vld [vmem:[#allocation3 + $0x168] sm:$0xff]
    %v193 = vld [vmem:[#allocation3 + $0x170] sm:$0xff]
    %v194 = vld [vmem:[#allocation3 + $0x178] sm:$0xff]
    %v195 = vld [vmem:[#allocation3 + $0x180] sm:$0xff]
    %v196 = vld [vmem:[#allocation3 + $0x188] sm:$0xff]
    %v197 = vld [vmem:[#allocation3 + $0x190] sm:$0xff]
    %v198 = vld [vmem:[#allocation3 + $0x198] sm:$0xff]
    %v199 = vld [vmem:[#allocation3 + $0x1a0] sm:$0xff]
    %v200 = vld [vmem:[#allocation3 + $0x1a8] sm:$0xff]
    %v201 = vld [vmem:[#allocation3 + $0x1b0] sm:$0xff]
    %v202 = vld [vmem:[#allocation3 + $0x1b8] sm:$0xff]
    %v203 = vld [vmem:[#allocation3 + $0x1c0] sm:$0xff]
    %v204 = vld [vmem:[#allocation3 + $0x1c8] sm:$0xff]
    %v205 = vld [vmem:[#allocation3 + $0x1d0] sm:$0xff]
    %v206 = vld [vmem:[#allocation3 + $0x1d8] sm:$0xff]
    %v207 = vld [vmem:[#allocation3 + $0x1e0] sm:$0xff]
    %v208 = vld [vmem:[#allocation3 + $0x1e8] sm:$0xff]
    %v209 = vld [vmem:[#allocation3 + $0x1f0] sm:$0xff]
    %v210 = vld [vmem:[#allocation3 + $0x1f8] sm:$0xff]
    %v211 = vld [vmem:[%s3] sm:$0xf]
    %v213 = vlaneseq
    %v214 = vshrl.u32 %v213, 7
    %v215 = vsub.s32 0, %v214
    %v216 = vrot.slane %v211, %v215
    %v217 = vlaneseq
    %v218 = vshrl.u32 %v217, 7
    %v219 = vsub.s32 1, %v218
    %v220 = vrot.slane %v211, %v219
    %v221 = vlaneseq
    %v222 = vshrl.u32 %v221, 7
    %v223 = vsub.s32 2, %v222
    %v224 = vrot.slane %v211, %v223
    %v225 = vlaneseq
    %v226 = vshrl.u32 %v225, 7
    %v227 = vsub.s32 3, %v226
    %v228 = vrot.slane %v211, %v227
    %233 = vmatprep.subr.mxu0 %v208
    %234 = vmatpush1.msra.mxu0 %v207
    %235 = vmatprep.subr.mxu0 %v204
    %236 = vmatpush1.msra.mxu0 %v203
    %237 = vmatprep.subr.mxu0 %v200
    %238 = vmatpush1.msra.mxu0 %v199
    %239 = vmatprep.subr.mxu0 %v196
    %240 = vmatpush1.msra.mxu0 %v195
    %241 = vmatprep.subr.mxu0 %v192
    %242 = vmatpush1.msra.mxu0 %v191
    %243 = vmatprep.subr.mxu0 %v188
    %244 = vmatpush1.msra.mxu0 %v187
    %245 = vmatprep.subr.mxu0 %v184
    %246 = vmatpush1.msra.mxu0 %v183
    %247 = vmatprep.subr.mxu0 %v180
    %248 = vmatpush1.msra.mxu0 %v179
    %249 = vmatprep.subr.mxu0 %v176
    %250 = vmatpush1.msra.mxu0 %v175
    %251 = vmatprep.subr.mxu0 %v172
    %252 = vmatpush1.msra.mxu0 %v171
    %253 = vmatprep.subr.mxu0 %v168
    %254 = vmatpush1.msra.mxu0 %v167
    %255 = vmatprep.subr.mxu0 %v164
    %256 = vmatpush1.msra.mxu0 %v163
    %257 = vmatprep.subr.mxu0 %v160
    %258 = vmatpush1.msra.mxu0 %v159
    %259 = vmatprep.subr.mxu0 %v156
    %260 = vmatpush1.msra.mxu0 %v155
    %261 = vmatprep.subr.mxu0 %v152
    %262 = vmatpush1.msra.mxu0 %v151
    %263 = vmatprep.subr.mxu0 %v148
    %264 = vmatpush1.msra.mxu0 %v147
    %265 = vmatprep.subr.mxu0 0.0
    %266 = vmatpush2.msra.mxu0 0.0
    %267 = vmatprep.subr.mxu0 0.0
    %268 = vmatpush2.msra.mxu0 0.0
    %269 = vmatprep.subr.mxu0 0.0
    %270 = vmatpush2.msra.mxu0 0.0
    %271 = vmatprep.subr.mxu0 0.0
    %272 = vmatpush2.msra.mxu0 0.0
    %273 = vmatprep.subr.mxu0 0.0
    %274 = vmatpush2.msra.mxu0 0.0
    %275 = vmatprep.subr.mxu0 0.0
    %276 = vmatpush2.msra.mxu0 0.0
    %277 = vmatprep.subr.mxu0 0.0
    %278 = vmatpush2.msra.mxu0 0.0
    %279 = vmatprep.subr.mxu0 0.0
    %280 = vmatpush2.msra.mxu0 0.0
    %281 = vmatprep.subr.mxu0 0.0
    %282 = vmatpush2.msra.mxu0 0.0
    %283 = vmatprep.subr.mxu0 0.0
    %284 = vmatpush2.msra.mxu0 0.0
    %285 = vmatprep.subr.mxu0 0.0
    %286 = vmatpush2.msra.mxu0 0.0
    %287 = vmatprep.subr.mxu0 0.0
    %288 = vmatpush2.msra.mxu0 0.0
    %289 = vmatprep.subr.mxu0 0.0
    %290 = vmatpush2.msra.mxu0 0.0
    %291 = vmatprep.subr.mxu0 0.0
    %292 = vmatpush2.msra.mxu0 0.0
    %293 = vmatprep.subr.mxu0 0.0
    %294 = vmatpush2.msra.mxu0 0.0
    %295 = vmatprep.subr.mxu0 0.0
    %296 = vmatpush2.msra.mxu0 0.0
    %297 = vmatprep.mubr.f32.mxu0 0.0
    %298 = vmatmul.mubr.f32.gmra.mxu0 %v139
    %v299 = vpop.f32.mrf.mxu0
    %v300 = vadd.f32 %v216, %v299
    %v301 = vpop.f32.mrf.mxu0
    %v302 = vadd.f32 %v220, %v301
    %303 = vmatprep.mubr.f32.mxu0 0.0
    %304 = vmatmul.mubr.f32.gmra.mxu0 %v140
    %v305 = vpop.f32.mrf.mxu0
    %v306 = vadd.f32 %v216, %v305
    %v307 = vpop.f32.mrf.mxu0
    %v308 = vadd.f32 %v220, %v307
    %309 = vmatprep.mubr.f32.mxu0 0.0
    %310 = vmatmul.mubr.f32.gmra.mxu0 %v141
    %v311 = vpop.f32.mrf.mxu0
    %v312 = vadd.f32 %v216, %v311
    %v313 = vpop.f32.mrf.mxu0
    %v314 = vadd.f32 %v220, %v313
    %315 = vmatprep.mubr.f32.mxu0 0.0
    %316 = vmatmul.mubr.f32.gmra.mxu0 %v142
    %v317 = vpop.f32.mrf.mxu0
    %v318 = vadd.f32 %v216, %v317
    %v319 = vpop.f32.mrf.mxu0
    %v320 = vadd.f32 %v220, %v319
    %321 = vmatprep.mubr.f32.mxu0 0.0
    %322 = vmatmul.mubr.f32.gmra.mxu0 %v143
    %v323 = vpop.f32.mrf.mxu0
    %v324 = vadd.f32 %v216, %v323
    %v325 = vpop.f32.mrf.mxu0
    %v326 = vadd.f32 %v220, %v325
    %327 = vmatprep.mubr.f32.mxu0 0.0
    %328 = vmatmul.mubr.f32.gmra.mxu0 %v144
    %v329 = vpop.f32.mrf.mxu0
    %v330 = vadd.f32 %v216, %v329
    %v331 = vpop.f32.mrf.mxu0
    %v332 = vadd.f32 %v220, %v331
    %333 = vmatprep.mubr.f32.mxu0 0.0
    %334 = vmatmul.mubr.f32.gmra.mxu0 %v145
    %v335 = vpop.f32.mrf.mxu0
    %v336 = vadd.f32 %v216, %v335
    %v337 = vpop.f32.mrf.mxu0
    %v338 = vadd.f32 %v220, %v337
    %339 = vmatprep.mubr.f32.mxu0 0.0
    %340 = vmatmul.mubr.f32.gmra.mxu0 %v146
    %v341 = vpop.f32.mrf.mxu0
    %v342 = vadd.f32 %v216, %v341
    %v343 = vpop.f32.mrf.mxu0
    %v344 = vadd.f32 %v220, %v343
    %345 = vdwg.mxu0
    %346 = vmatprep.subr.mxu0 %v210
    %347 = vmatpush1.msra.mxu0 %v209
    %348 = vmatprep.subr.mxu0 %v206
    %349 = vmatpush1.msra.mxu0 %v205
    %350 = vmatprep.subr.mxu0 %v202
    %351 = vmatpush1.msra.mxu0 %v201
    %352 = vmatprep.subr.mxu0 %v198
    %353 = vmatpush1.msra.mxu0 %v197
    %354 = vmatprep.subr.mxu0 %v194
    %355 = vmatpush1.msra.mxu0 %v193
    %356 = vmatprep.subr.mxu0 %v190
    %357 = vmatpush1.msra.mxu0 %v189
    %358 = vmatprep.subr.mxu0 %v186
    %359 = vmatpush1.msra.mxu0 %v185
    %360 = vmatprep.subr.mxu0 %v182
    %361 = vmatpush1.msra.mxu0 %v181
    %362 = vmatprep.subr.mxu0 %v178
    %363 = vmatpush1.msra.mxu0 %v177
    %364 = vmatprep.subr.mxu0 %v174
    %365 = vmatpush1.msra.mxu0 %v173
    %366 = vmatprep.subr.mxu0 %v170
    %367 = vmatpush1.msra.mxu0 %v169
    %368 = vmatprep.subr.mxu0 %v166
    %369 = vmatpush1.msra.mxu0 %v165
    %370 = vmatprep.subr.mxu0 %v162
    %371 = vmatpush1.msra.mxu0 %v161
    %372 = vmatprep.subr.mxu0 %v158
    %373 = vmatpush1.msra.mxu0 %v157
    %374 = vmatprep.subr.mxu0 %v154
    %375 = vmatpush1.msra.mxu0 %v153
    %376 = vmatprep.subr.mxu0 %v150
    %377 = vmatpush1.msra.mxu0 %v149
    %378 = vmatprep.subr.mxu0 0.0
    %379 = vmatpush2.msra.mxu0 0.0
    %380 = vmatprep.subr.mxu0 0.0
    %381 = vmatpush2.msra.mxu0 0.0
    %382 = vmatprep.subr.mxu0 0.0
    %383 = vmatpush2.msra.mxu0 0.0
    %384 = vmatprep.subr.mxu0 0.0
    %385 = vmatpush2.msra.mxu0 0.0
    %386 = vmatprep.subr.mxu0 0.0
    %387 = vmatpush2.msra.mxu0 0.0
    %388 = vmatprep.subr.mxu0 0.0
    %389 = vmatpush2.msra.mxu0 0.0
    %390 = vmatprep.subr.mxu0 0.0
    %391 = vmatpush2.msra.mxu0 0.0
    %392 = vmatprep.subr.mxu0 0.0
    %393 = vmatpush2.msra.mxu0 0.0
    %394 = vmatprep.subr.mxu0 0.0
    %395 = vmatpush2.msra.mxu0 0.0
    %396 = vmatprep.subr.mxu0 0.0
    %397 = vmatpush2.msra.mxu0 0.0
    %398 = vmatprep.subr.mxu0 0.0
    %399 = vmatpush2.msra.mxu0 0.0
    %400 = vmatprep.subr.mxu0 0.0
    %401 = vmatpush2.msra.mxu0 0.0
    %402 = vmatprep.subr.mxu0 0.0
    %403 = vmatpush2.msra.mxu0 0.0
    %404 = vmatprep.subr.mxu0 0.0
    %405 = vmatpush2.msra.mxu0 0.0
    %406 = vmatprep.subr.mxu0 0.0
    %407 = vmatpush2.msra.mxu0 0.0
    %408 = vmatprep.subr.mxu0 0.0
    %409 = vmatpush2.msra.mxu0 0.0
    %410 = vmatprep.mubr.f32.mxu0 0.0
    %411 = vmatmul.mubr.f32.gmra.mxu0 %v139
    %v412 = vpop.f32.mrf.mxu0
    %v413 = vadd.f32 %v224, %v412
    %v414 = vpop.f32.mrf.mxu0
    %v415 = vadd.f32 %v228, %v414
    %416 = vmatprep.mubr.f32.mxu0 0.0
    %417 = vmatmul.mubr.f32.gmra.mxu0 %v140
    %v418 = vpop.f32.mrf.mxu0
    %v419 = vadd.f32 %v224, %v418
    %v420 = vpop.f32.mrf.mxu0
    %v421 = vadd.f32 %v228, %v420
    %422 = vmatprep.mubr.f32.mxu0 0.0
    %423 = vmatmul.mubr.f32.gmra.mxu0 %v141
    %v424 = vpop.f32.mrf.mxu0
    %v425 = vadd.f32 %v224, %v424
    %v426 = vpop.f32.mrf.mxu0
    %v427 = vadd.f32 %v228, %v426
    %428 = vmatprep.mubr.f32.mxu0 0.0
    %429 = vmatmul.mubr.f32.gmra.mxu0 %v142
    %v430 = vpop.f32.mrf.mxu0
    %v431 = vadd.f32 %v224, %v430
    %v432 = vpop.f32.mrf.mxu0
    %v433 = vadd.f32 %v228, %v432
    %434 = vmatprep.mubr.f32.mxu0 0.0
    %435 = vmatmul.mubr.f32.gmra.mxu0 %v143
    %v436 = vpop.f32.mrf.mxu0
    %v437 = vadd.f32 %v224, %v436
    %v438 = vpop.f32.mrf.mxu0
    %v439 = vadd.f32 %v228, %v438
    %440 = vmatprep.mubr.f32.mxu0 0.0
    %441 = vmatmul.mubr.f32.gmra.mxu0 %v144
    %v442 = vpop.f32.mrf.mxu0
    %v443 = vadd.f32 %v224, %v442
    %v444 = vpop.f32.mrf.mxu0
    %v445 = vadd.f32 %v228, %v444
    %446 = vmatprep.mubr.f32.mxu0 0.0
    %447 = vmatmul.mubr.f32.gmra.mxu0 %v145
    %v448 = vpop.f32.mrf.mxu0
    %v449 = vadd.f32 %v224, %v448
    %v450 = vpop.f32.mrf.mxu0
    %v451 = vadd.f32 %v228, %v450
    %452 = vmatprep.mubr.f32.mxu0 0.0
    %453 = vmatmul.mubr.f32.gmra.mxu0 %v146
    %v454 = vpop.f32.mrf.mxu0
    %v455 = vadd.f32 %v224, %v454
    %v456 = vpop.f32.mrf.mxu0
    %v457 = vadd.f32 %v228, %v456
    %458 = vdwg.mxu0
    %459 = vst [vmem:[#allocation2] sm:$0xff] %v300
    %460 = vst [vmem:[#allocation2 + $0x8] sm:$0xff] %v302
    %461 = vst [vmem:[#allocation2 + $0x10] sm:$0xff] %v413
    %462 = vst [vmem:[#allocation2 + $0x18] sm:$0xff] %v415
    %463 = vst [vmem:[#allocation2 + $0x20] sm:$0xff] %v306
    %464 = vst [vmem:[#allocation2 + $0x28] sm:$0xff] %v308
    %465 = vst [vmem:[#allocation2 + $0x30] sm:$0xff] %v419
    %466 = vst [vmem:[#allocation2 + $0x38] sm:$0xff] %v421
    %467 = vst [vmem:[#allocation2 + $0x40] sm:$0xff] %v312
    %468 = vst [vmem:[#allocation2 + $0x48] sm:$0xff] %v314
    %469 = vst [vmem:[#allocation2 + $0x50] sm:$0xff] %v425
    %470 = vst [vmem:[#allocation2 + $0x58] sm:$0xff] %v427
    %471 = vst [vmem:[#allocation2 + $0x60] sm:$0xff] %v318
    %472 = vst [vmem:[#allocation2 + $0x68] sm:$0xff] %v320
    %473 = vst [vmem:[#allocation2 + $0x70] sm:$0xff] %v431
    %474 = vst [vmem:[#allocation2 + $0x78] sm:$0xff] %v433
    %475 = vst [vmem:[#allocation2 + $0x80] sm:$0xff] %v324
    %476 = vst [vmem:[#allocation2 + $0x88] sm:$0xff] %v326
    %477 = vst [vmem:[#allocation2 + $0x90] sm:$0xff] %v437
    %478 = vst [vmem:[#allocation2 + $0x98] sm:$0xff] %v439
    %479 = vst [vmem:[#allocation2 + $0xa0] sm:$0xff] %v330
    %480 = vst [vmem:[#allocation2 + $0xa8] sm:$0xff] %v332
    %481 = vst [vmem:[#allocation2 + $0xb0] sm:$0xff] %v443
    %482 = vst [vmem:[#allocation2 + $0xb8] sm:$0xff] %v445
    %483 = vst [vmem:[#allocation2 + $0xc0] sm:$0xff] %v336
    %484 = vst [vmem:[#allocation2 + $0xc8] sm:$0xff] %v338
    %485 = vst [vmem:[#allocation2 + $0xd0] sm:$0xff] %v449
    %486 = vst [vmem:[#allocation2 + $0xd8] sm:$0xff] %v451
    %487 = vst [vmem:[#allocation2 + $0xe0] sm:$0xff] %v342
    %488 = vst [vmem:[#allocation2 + $0xe8] sm:$0xff] %v344
    %489 = vst [vmem:[#allocation2 + $0xf0] sm:$0xff] %v455
    %490 = vst [vmem:[#allocation2 + $0xf8] sm:$0xff] %v457
    %v491 = vld [vmem:[#allocation2] sm:$0xff]
    %v492 = vld [vmem:[#allocation2 + $0x8] sm:$0xff]
    %v493 = vld [vmem:[#allocation2 + $0x10] sm:$0xff]
    %v494 = vld [vmem:[#allocation2 + $0x18] sm:$0xff]
    %v495 = vld [vmem:[#allocation5] sm:$0xff]
    %v496 = vld [vmem:[#allocation5 + $0x8] sm:$0xff]
    %v497 = vld [vmem:[#allocation5 + $0x10] sm:$0xff]
    %v498 = vld [vmem:[#allocation5 + $0x18] sm:$0xff]
    %v499 = vld [vmem:[#allocation5 + $0x20] sm:$0xff]
    %v500 = vld [vmem:[#allocation5 + $0x28] sm:$0xff]
    %v501 = vld [vmem:[#allocation5 + $0x30] sm:$0xff]
    %v502 = vld [vmem:[#allocation5 + $0x38] sm:$0xff]
    %v503 = vld [vmem:[#allocation5 + $0x40] sm:$0xff]
    %v504 = vld [vmem:[#allocation5 + $0x48] sm:$0xff]
    %v505 = vld [vmem:[#allocation5 + $0x50] sm:$0xff]
    %v506 = vld [vmem:[#allocation5 + $0x58] sm:$0xff]
    %v507 = vld [vmem:[#allocation5 + $0x60] sm:$0xff]
    %v508 = vld [vmem:[#allocation5 + $0x68] sm:$0xff]
    %v509 = vld [vmem:[#allocation5 + $0x70] sm:$0xff]
    %v510 = vld [vmem:[#allocation5 + $0x78] sm:$0xff]
    %v511 = vld [vmem:[#allocation5 + $0x80] sm:$0xff]
    %v512 = vld [vmem:[#allocation5 + $0x88] sm:$0xff]
    %v513 = vld [vmem:[#allocation5 + $0x90] sm:$0xff]
    %v514 = vld [vmem:[#allocation5 + $0x98] sm:$0xff]
    %v515 = vld [vmem:[#allocation5 + $0xa0] sm:$0xff]
    %v516 = vld [vmem:[#allocation5 + $0xa8] sm:$0xff]
    %v517 = vld [vmem:[#allocation5 + $0xb0] sm:$0xff]
    %v518 = vld [vmem:[#allocation5 + $0xb8] sm:$0xff]
    %v519 = vld [vmem:[#allocation5 + $0xc0] sm:$0xff]
    %v520 = vld [vmem:[#allocation5 + $0xc8] sm:$0xff]
    %v521 = vld [vmem:[#allocation5 + $0xd0] sm:$0xff]
    %v522 = vld [vmem:[#allocation5 + $0xd8] sm:$0xff]
    %v523 = vld [vmem:[#allocation5 + $0xe0] sm:$0xff]
    %v524 = vld [vmem:[#allocation5 + $0xe8] sm:$0xff]
    %v525 = vld [vmem:[#allocation5 + $0xf0] sm:$0xff]
    %v526 = vld [vmem:[#allocation5 + $0xf8] sm:$0xff]
    %v527 = vld [vmem:[#allocation5 + $0x100] sm:$0xff]
    %v528 = vld [vmem:[#allocation5 + $0x108] sm:$0xff]
    %v529 = vld [vmem:[#allocation5 + $0x110] sm:$0xff]
    %v530 = vld [vmem:[#allocation5 + $0x118] sm:$0xff]
    %v531 = vld [vmem:[#allocation5 + $0x120] sm:$0xff]
    %v532 = vld [vmem:[#allocation5 + $0x128] sm:$0xff]
    %v533 = vld [vmem:[#allocation5 + $0x130] sm:$0xff]
    %v534 = vld [vmem:[#allocation5 + $0x138] sm:$0xff]
    %v535 = vld [vmem:[#allocation5 + $0x140] sm:$0xff]
    %v536 = vld [vmem:[#allocation5 + $0x148] sm:$0xff]
    %v537 = vld [vmem:[#allocation5 + $0x150] sm:$0xff]
    %v538 = vld [vmem:[#allocation5 + $0x158] sm:$0xff]
    %v539 = vld [vmem:[#allocation5 + $0x160] sm:$0xff]
    %v540 = vld [vmem:[#allocation5 + $0x168] sm:$0xff]
    %v541 = vld [vmem:[#allocation5 + $0x170] sm:$0xff]
    %v542 = vld [vmem:[#allocation5 + $0x178] sm:$0xff]
    %v543 = vld [vmem:[#allocation5 + $0x180] sm:$0xff]
    %v544 = vld [vmem:[#allocation5 + $0x188] sm:$0xff]
    %v545 = vld [vmem:[#allocation5 + $0x190] sm:$0xff]
    %v546 = vld [vmem:[#allocation5 + $0x198] sm:$0xff]
    %v547 = vld [vmem:[#allocation5 + $0x1a0] sm:$0xff]
    %v548 = vld [vmem:[#allocation5 + $0x1a8] sm:$0xff]
    %v549 = vld [vmem:[#allocation5 + $0x1b0] sm:$0xff]
    %v550 = vld [vmem:[#allocation5 + $0x1b8] sm:$0xff]
    %v551 = vld [vmem:[#allocation5 + $0x1c0] sm:$0xff]
    %v552 = vld [vmem:[#allocation5 + $0x1c8] sm:$0xff]
    %v553 = vld [vmem:[#allocation5 + $0x1d0] sm:$0xff]
    %v554 = vld [vmem:[#allocation5 + $0x1d8] sm:$0xff]
    %v555 = vld [vmem:[#allocation5 + $0x1e0] sm:$0xff]
    %v556 = vld [vmem:[#allocation5 + $0x1e8] sm:$0xff]
    %v557 = vld [vmem:[#allocation5 + $0x1f0] sm:$0xff]
    %v558 = vld [vmem:[#allocation5 + $0x1f8] sm:$0xff]
    %559 = vmatprep.subr.mxu0 %v556
    %560 = vmatpush1.msra.mxu0 %v555
    %561 = vmatprep.subr.mxu0 %v552
    %562 = vmatpush1.msra.mxu0 %v551
    %563 = vmatprep.subr.mxu0 %v548
    %564 = vmatpush1.msra.mxu0 %v547
    %565 = vmatprep.subr.mxu0 %v544
    %566 = vmatpush1.msra.mxu0 %v543
    %567 = vmatprep.subr.mxu0 %v540
    %568 = vmatpush1.msra.mxu0 %v539
    %569 = vmatprep.subr.mxu0 %v536
    %570 = vmatpush1.msra.mxu0 %v535
    %571 = vmatprep.subr.mxu0 %v532
    %572 = vmatpush1.msra.mxu0 %v531
    %573 = vmatprep.subr.mxu0 %v528
    %574 = vmatpush1.msra.mxu0 %v527
    %575 = vmatprep.subr.mxu0 %v524
    %576 = vmatpush1.msra.mxu0 %v523
    %577 = vmatprep.subr.mxu0 %v520
    %578 = vmatpush1.msra.mxu0 %v519
    %579 = vmatprep.subr.mxu0 %v516
    %580 = vmatpush1.msra.mxu0 %v515
    %581 = vmatprep.subr.mxu0 %v512
    %582 = vmatpush1.msra.mxu0 %v511
    %583 = vmatprep.subr.mxu0 %v508
    %584 = vmatpush1.msra.mxu0 %v507
    %585 = vmatprep.subr.mxu0 %v504
    %586 = vmatpush1.msra.mxu0 %v503
    %587 = vmatprep.subr.mxu0 %v500
    %588 = vmatpush1.msra.mxu0 %v499
    %589 = vmatprep.subr.mxu0 %v496
    %590 = vmatpush1.msra.mxu0 %v495
    %591 = vmatprep.subr.mxu0 0.0
    %592 = vmatpush2.msra.mxu0 0.0
    %593 = vmatprep.subr.mxu0 0.0
    %594 = vmatpush2.msra.mxu0 0.0
    %595 = vmatprep.subr.mxu0 0.0
    %596 = vmatpush2.msra.mxu0 0.0
    %597 = vmatprep.subr.mxu0 0.0
    %598 = vmatpush2.msra.mxu0 0.0
    %599 = vmatprep.subr.mxu0 0.0
    %600 = vmatpush2.msra.mxu0 0.0
    %601 = vmatprep.subr.mxu0 0.0
    %602 = vmatpush2.msra.mxu0 0.0
    %603 = vmatprep.subr.mxu0 0.0
    %604 = vmatpush2.msra.mxu0 0.0
    %605 = vmatprep.subr.mxu0 0.0
    %606 = vmatpush2.msra.mxu0 0.0
    %607 = vmatprep.subr.mxu0 0.0
    %608 = vmatpush2.msra.mxu0 0.0
    %609 = vmatprep.subr.mxu0 0.0
    %610 = vmatpush2.msra.mxu0 0.0
    %611 = vmatprep.subr.mxu0 0.0
    %612 = vmatpush2.msra.mxu0 0.0
    %613 = vmatprep.subr.mxu0 0.0
    %614 = vmatpush2.msra.mxu0 0.0
    %615 = vmatprep.subr.mxu0 0.0
    %616 = vmatpush2.msra.mxu0 0.0
    %617 = vmatprep.subr.mxu0 0.0
    %618 = vmatpush2.msra.mxu0 0.0
    %619 = vmatprep.subr.mxu0 0.0
    %620 = vmatpush2.msra.mxu0 0.0
    %621 = vmatprep.subr.mxu0 0.0
    %622 = vmatpush2.msra.mxu0 0.0
    %623 = vmatprep.mubr.f32.mxu0 0.0
    %624 = vmatmul.mubr.f32.gmra.mxu0 0.0
    %v625 = vpop.f32.mrf.mxu0
    %v626 = vadd.f32 0.0, %v625
    %v627 = vpop.f32.mrf.mxu0
    %v628 = vadd.f32 0.0, %v627
    %629 = vdwg.mxu0
    %630 = vmatprep.subr.mxu0 %v558
    %631 = vmatpush1.msra.mxu0 %v557
    %632 = vmatprep.subr.mxu0 %v554
    %633 = vmatpush1.msra.mxu0 %v553
    %634 = vmatprep.subr.mxu0 %v550
    %635 = vmatpush1.msra.mxu0 %v549
    %636 = vmatprep.subr.mxu0 %v546
    %637 = vmatpush1.msra.mxu0 %v545
    %638 = vmatprep.subr.mxu0 %v542
    %639 = vmatpush1.msra.mxu0 %v541
    %640 = vmatprep.subr.mxu0 %v538
    %641 = vmatpush1.msra.mxu0 %v537
    %642 = vmatprep.subr.mxu0 %v534
    %643 = vmatpush1.msra.mxu0 %v533
    %644 = vmatprep.subr.mxu0 %v530
    %645 = vmatpush1.msra.mxu0 %v529
    %646 = vmatprep.subr.mxu0 %v526
    %647 = vmatpush1.msra.mxu0 %v525
    %648 = vmatprep.subr.mxu0 %v522
    %649 = vmatpush1.msra.mxu0 %v521
    %650 = vmatprep.subr.mxu0 %v518
    %651 = vmatpush1.msra.mxu0 %v517
    %652 = vmatprep.subr.mxu0 %v514
    %653 = vmatpush1.msra.mxu0 %v513
    %654 = vmatprep.subr.mxu0 %v510
    %655 = vmatpush1.msra.mxu0 %v509
    %656 = vmatprep.subr.mxu0 %v506
    %657 = vmatpush1.msra.mxu0 %v505
    %658 = vmatprep.subr.mxu0 %v502
    %659 = vmatpush1.msra.mxu0 %v501
    %660 = vmatprep.subr.mxu0 %v498
    %661 = vmatpush1.msra.mxu0 %v497
    %662 = vmatprep.subr.mxu0 0.0
    %663 = vmatpush2.msra.mxu0 0.0
    %664 = vmatprep.subr.mxu0 0.0
    %665 = vmatpush2.msra.mxu0 0.0
    %666 = vmatprep.subr.mxu0 0.0
    %667 = vmatpush2.msra.mxu0 0.0
    %668 = vmatprep.subr.mxu0 0.0
    %669 = vmatpush2.msra.mxu0 0.0
    %670 = vmatprep.subr.mxu0 0.0
    %671 = vmatpush2.msra.mxu0 0.0
    %672 = vmatprep.subr.mxu0 0.0
    %673 = vmatpush2.msra.mxu0 0.0
    %674 = vmatprep.subr.mxu0 0.0
    %675 = vmatpush2.msra.mxu0 0.0
    %676 = vmatprep.subr.mxu0 0.0
    %677 = vmatpush2.msra.mxu0 0.0
    %678 = vmatprep.subr.mxu0 0.0
    %679 = vmatpush2.msra.mxu0 0.0
    %680 = vmatprep.subr.mxu0 0.0
    %681 = vmatpush2.msra.mxu0 0.0
    %682 = vmatprep.subr.mxu0 0.0
    %683 = vmatpush2.msra.mxu0 0.0
    %684 = vmatprep.subr.mxu0 0.0
    %685 = vmatpush2.msra.mxu0 0.0
    %686 = vmatprep.subr.mxu0 0.0
    %687 = vmatpush2.msra.mxu0 0.0
    %688 = vmatprep.subr.mxu0 0.0
    %689 = vmatpush2.msra.mxu0 0.0
    %690 = vmatprep.subr.mxu0 0.0
    %691 = vmatpush2.msra.mxu0 0.0
    %692 = vmatprep.subr.mxu0 0.0
    %693 = vmatpush2.msra.mxu0 0.0
    %694 = vmatprep.mubr.f32.mxu0 0.0
    %695 = vmatmul.mubr.f32.gmra.mxu0 0.0
    %v696 = vpop.f32.mrf.mxu0
    %v697 = vadd.f32 0.0, %v696
    %v698 = vpop.f32.mrf.mxu0
    %v699 = vadd.f32 0.0, %v698
    %700 = vdwg.mxu0
    %v701 = vadd.f32 %v491, %v626
    %v702 = vadd.f32 %v492, %v628
    %v703 = vadd.f32 %v493, %v697
    %v704 = vadd.f32 %v494, %v699
    %v705 = vmul.f32 %v701, 0.5
    %v706 = vmul.f32 %v702, 0.5
    %v707 = vmul.f32 %v703, 0.5
    %v708 = vtanh.pop %v705
    %v709 = vtanh.pop %v706
    %v710 = vtanh.pop %v707
    %v711 = vmul.f32 %v708, 0.5
    %v712 = vmul.f32 %v709, 0.5
    %v713 = vmul.f32 %v710, 0.5
    %v714 = vadd.f32 %v711, 0.5
    %v715 = vadd.f32 %v712, 0.5
    %v716 = vadd.f32 %v713, 0.5
    %v717 = vtanh.pop %v704
    %v718 = vmul.f32 %v715, 0.0
    %v719 = vmul.f32 %v714, %v717
    %v720 = vadd.f32 %v718, %v719
    %v721 = vtanh.pop %v720
    %v722 = vmul.f32 %v716, %v721
    %s723 = scalar_lea.vmem [#allocation2], 32
    %v724 = vld [vmem:[%s723] sm:$0xff]
    %v725 = vld [vmem:[%s723 + $0x8] sm:$0xff]
    %v726 = vld [vmem:[%s723 + $0x10] sm:$0xff]
    %v727 = vld [vmem:[%s723 + $0x18] sm:$0xff]
    %728 = vmatprep.subr.mxu0 %v556
    %729 = vmatpush1.msra.mxu0 %v555
    %730 = vmatprep.subr.mxu0 %v552
    %731 = vmatpush1.msra.mxu0 %v551
    %732 = vmatprep.subr.mxu0 %v548
    %733 = vmatpush1.msra.mxu0 %v547
    %734 = vmatprep.subr.mxu0 %v544
    %735 = vmatpush1.msra.mxu0 %v543
    %736 = vmatprep.subr.mxu0 %v540
    %737 = vmatpush1.msra.mxu0 %v539
    %738 = vmatprep.subr.mxu0 %v536
    %739 = vmatpush1.msra.mxu0 %v535
    %740 = vmatprep.subr.mxu0 %v532
    %741 = vmatpush1.msra.mxu0 %v531
    %742 = vmatprep.subr.mxu0 %v528
    %743 = vmatpush1.msra.mxu0 %v527
    %744 = vmatprep.subr.mxu0 %v524
    %745 = vmatpush1.msra.mxu0 %v523
    %746 = vmatprep.subr.mxu0 %v520
    %747 = vmatpush1.msra.mxu0 %v519
    %748 = vmatprep.subr.mxu0 %v516
    %749 = vmatpush1.msra.mxu0 %v515
    %750 = vmatprep.subr.mxu0 %v512
    %751 = vmatpush1.msra.mxu0 %v511
    %752 = vmatprep.subr.mxu0 %v508
    %753 = vmatpush1.msra.mxu0 %v507
    %754 = vmatprep.subr.mxu0 %v504
    %755 = vmatpush1.msra.mxu0 %v503
    %756 = vmatprep.subr.mxu0 %v500
    %757 = vmatpush1.msra.mxu0 %v499
    %758 = vmatprep.subr.mxu0 %v496
    %759 = vmatpush1.msra.mxu0 %v495
    %760 = vmatprep.subr.mxu0 0.0
    %761 = vmatpush2.msra.mxu0 0.0
    %762 = vmatprep.subr.mxu0 0.0
    %763 = vmatpush2.msra.mxu0 0.0
    %764 = vmatprep.subr.mxu0 0.0
    %765 = vmatpush2.msra.mxu0 0.0
    %766 = vmatprep.subr.mxu0 0.0
    %767 = vmatpush2.msra.mxu0 0.0
    %768 = vmatprep.subr.mxu0 0.0
    %769 = vmatpush2.msra.mxu0 0.0
    %770 = vmatprep.subr.mxu0 0.0
    %771 = vmatpush2.msra.mxu0 0.0
    %772 = vmatprep.subr.mxu0 0.0
    %773 = vmatpush2.msra.mxu0 0.0
    %774 = vmatprep.subr.mxu0 0.0
    %775 = vmatpush2.msra.mxu0 0.0
    %776 = vmatprep.subr.mxu0 0.0
    %777 = vmatpush2.msra.mxu0 0.0
    %778 = vmatprep.subr.mxu0 0.0
    %779 = vmatpush2.msra.mxu0 0.0
    %780 = vmatprep.subr.mxu0 0.0
    %781 = vmatpush2.msra.mxu0 0.0
    %782 = vmatprep.subr.mxu0 0.0
    %783 = vmatpush2.msra.mxu0 0.0
    %784 = vmatprep.subr.mxu0 0.0
    %785 = vmatpush2.msra.mxu0 0.0
    %786 = vmatprep.subr.mxu0 0.0
    %787 = vmatpush2.msra.mxu0 0.0
    %788 = vmatprep.subr.mxu0 0.0
    %789 = vmatpush2.msra.mxu0 0.0
    %790 = vmatprep.subr.mxu0 0.0
    %791 = vmatpush2.msra.mxu0 0.0
    %792 = vmatprep.mubr.f32.mxu0 0.0
    %793 = vmatmul.mubr.f32.gmra.mxu0 %v722
    %v794 = vpop.f32.mrf.mxu0
    %v795 = vadd.f32 0.0, %v794
    %v796 = vpop.f32.mrf.mxu0
    %v797 = vadd.f32 0.0, %v796
    %798 = vdwg.mxu0
    %799 = vmatprep.subr.mxu0 %v558
    %800 = vmatpush1.msra.mxu0 %v557
    %801 = vmatprep.subr.mxu0 %v554
    %802 = vmatpush1.msra.mxu0 %v553
    %803 = vmatprep.subr.mxu0 %v550
    %804 = vmatpush1.msra.mxu0 %v549
    %805 = vmatprep.subr.mxu0 %v546
    %806 = vmatpush1.msra.mxu0 %v545
    %807 = vmatprep.subr.mxu0 %v542
    %808 = vmatpush1.msra.mxu0 %v541
    %809 = vmatprep.subr.mxu0 %v538
    %810 = vmatpush1.msra.mxu0 %v537
    %811 = vmatprep.subr.mxu0 %v534
    %812 = vmatpush1.msra.mxu0 %v533
    %813 = vmatprep.subr.mxu0 %v530
    %814 = vmatpush1.msra.mxu0 %v529
    %815 = vmatprep.subr.mxu0 %v526
    %816 = vmatpush1.msra.mxu0 %v525
    %817 = vmatprep.subr.mxu0 %v522
    %818 = vmatpush1.msra.mxu0 %v521
    %819 = vmatprep.subr.mxu0 %v518
    %820 = vmatpush1.msra.mxu0 %v517
    %821 = vmatprep.subr.mxu0 %v514
    %822 = vmatpush1.msra.mxu0 %v513
    %823 = vmatprep.subr.mxu0 %v510
    %824 = vmatpush1.msra.mxu0 %v509
    %825 = vmatprep.subr.mxu0 %v506
    %826 = vmatpush1.msra.mxu0 %v505
    %827 = vmatprep.subr.mxu0 %v502
    %828 = vmatpush1.msra.mxu0 %v501
    %829 = vmatprep.subr.mxu0 %v498
    %830 = vmatpush1.msra.mxu0 %v497
    %831 = vmatprep.subr.mxu0 0.0
    %832 = vmatpush2.msra.mxu0 0.0
    %833 = vmatprep.subr.mxu0 0.0
    %834 = vmatpush2.msra.mxu0 0.0
    %835 = vmatprep.subr.mxu0 0.0
    %836 = vmatpush2.msra.mxu0 0.0
    %837 = vmatprep.subr.mxu0 0.0
    %838 = vmatpush2.msra.mxu0 0.0
    %839 = vmatprep.subr.mxu0 0.0
    %840 = vmatpush2.msra.mxu0 0.0
    %841 = vmatprep.subr.mxu0 0.0
    %842 = vmatpush2.msra.mxu0 0.0
    %843 = vmatprep.subr.mxu0 0.0
    %844 = vmatpush2.msra.mxu0 0.0
    %845 = vmatprep.subr.mxu0 0.0
    %846 = vmatpush2.msra.mxu0 0.0
    %847 = vmatprep.subr.mxu0 0.0
    %848 = vmatpush2.msra.mxu0 0.0
    %849 = vmatprep.subr.mxu0 0.0
    %850 = vmatpush2.msra.mxu0 0.0
    %851 = vmatprep.subr.mxu0 0.0
    %852 = vmatpush2.msra.mxu0 0.0
    %853 = vmatprep.subr.mxu0 0.0
    %854 = vmatpush2.msra.mxu0 0.0
    %855 = vmatprep.subr.mxu0 0.0
    %856 = vmatpush2.msra.mxu0 0.0
    %857 = vmatprep.subr.mxu0 0.0
    %858 = vmatpush2.msra.mxu0 0.0
    %859 = vmatprep.subr.mxu0 0.0
    %860 = vmatpush2.msra.mxu0 0.0
    %861 = vmatprep.subr.mxu0 0.0
    %862 = vmatpush2.msra.mxu0 0.0
    %863 = vmatprep.mubr.f32.mxu0 0.0
    %864 = vmatmul.mubr.f32.gmra.mxu0 %v722
    %v865 = vpop.f32.mrf.mxu0
    %v866 = vadd.f32 0.0, %v865
    %v867 = vpop.f32.mrf.mxu0
    %v868 = vadd.f32 0.0, %v867
    %869 = vdwg.mxu0
    %v870 = vadd.f32 %v724, %v795
    %v871 = vadd.f32 %v725, %v797
    %v872 = vadd.f32 %v726, %v866
    %v873 = vadd.f32 %v727, %v868
    %v874 = vmul.f32 %v870, 0.5
    %v875 = vmul.f32 %v871, 0.5
    %v876 = vmul.f32 %v872, 0.5
    %v877 = vtanh.pop %v874
    %v878 = vtanh.pop %v875
    %v879 = vtanh.pop %v876
    %v880 = vmul.f32 %v877, 0.5
    %v881 = vmul.f32 %v878, 0.5
    %v882 = vmul.f32 %v879, 0.5
    %v883 = vadd.f32 %v880, 0.5
    %v884 = vadd.f32 %v881, 0.5
    %v885 = vadd.f32 %v882, 0.5
    %v886 = vtanh.pop %v873
    %v887 = vmul.f32 %v884, %v720
    %v888 = vmul.f32 %v883, %v886
    %v889 = vadd.f32 %v887, %v888
    %v890 = vtanh.pop %v889
    %v891 = vmul.f32 %v885, %v890
    %s892 = scalar_lea.vmem [#allocation2], 64
    %v893 = vld [vmem:[%s892] sm:$0xff]
    %v894 = vld [vmem:[%s892 + $0x8] sm:$0xff]
    %v895 = vld [vmem:[%s892 + $0x10] sm:$0xff]
    %v896 = vld [vmem:[%s892 + $0x18] sm:$0xff]
    %897 = vmatprep.subr.mxu0 %v556
    %898 = vmatpush1.msra.mxu0 %v555
    %899 = vmatprep.subr.mxu0 %v552
    %900 = vmatpush1.msra.mxu0 %v551
    %901 = vmatprep.subr.mxu0 %v548
    %902 = vmatpush1.msra.mxu0 %v547
    %903 = vmatprep.subr.mxu0 %v544
    %904 = vmatpush1.msra.mxu0 %v543
    %905 = vmatprep.subr.mxu0 %v540
    %906 = vmatpush1.msra.mxu0 %v539
    %907 = vmatprep.subr.mxu0 %v536
    %908 = vmatpush1.msra.mxu0 %v535
    %909 = vmatprep.subr.mxu0 %v532
    %910 = vmatpush1.msra.mxu0 %v531
    %911 = vmatprep.subr.mxu0 %v528
    %912 = vmatpush1.msra.mxu0 %v527
    %913 = vmatprep.subr.mxu0 %v524
    %914 = vmatpush1.msra.mxu0 %v523
    %915 = vmatprep.subr.mxu0 %v520
    %916 = vmatpush1.msra.mxu0 %v519
    %917 = vmatprep.subr.mxu0 %v516
    %918 = vmatpush1.msra.mxu0 %v515
    %919 = vmatprep.subr.mxu0 %v512
    %920 = vmatpush1.msra.mxu0 %v511
    %921 = vmatprep.subr.mxu0 %v508
    %922 = vmatpush1.msra.mxu0 %v507
    %923 = vmatprep.subr.mxu0 %v504
    %924 = vmatpush1.msra.mxu0 %v503
    %925 = vmatprep.subr.mxu0 %v500
    %926 = vmatpush1.msra.mxu0 %v499
    %927 = vmatprep.subr.mxu0 %v496
    %928 = vmatpush1.msra.mxu0 %v495
    %929 = vmatprep.subr.mxu0 0.0
    %930 = vmatpush2.msra.mxu0 0.0
    %931 = vmatprep.subr.mxu0 0.0
    %932 = vmatpush2.msra.mxu0 0.0
    %933 = vmatprep.subr.mxu0 0.0
    %934 = vmatpush2.msra.mxu0 0.0
    %935 = vmatprep.subr.mxu0 0.0
    %936 = vmatpush2.msra.mxu0 0.0
    %937 = vmatprep.subr.mxu0 0.0
    %938 = vmatpush2.msra.mxu0 0.0
    %939 = vmatprep.subr.mxu0 0.0
    %940 = vmatpush2.msra.mxu0 0.0
    %941 = vmatprep.subr.mxu0 0.0
    %942 = vmatpush2.msra.mxu0 0.0
    %943 = vmatprep.subr.mxu0 0.0
    %944 = vmatpush2.msra.mxu0 0.0
    %945 = vmatprep.subr.mxu0 0.0
    %946 = vmatpush2.msra.mxu0 0.0
    %947 = vmatprep.subr.mxu0 0.0
    %948 = vmatpush2.msra.mxu0 0.0
    %949 = vmatprep.subr.mxu0 0.0
    %950 = vmatpush2.msra.mxu0 0.0
    %951 = vmatprep.subr.mxu0 0.0
    %952 = vmatpush2.msra.mxu0 0.0
    %953 = vmatprep.subr.mxu0 0.0
    %954 = vmatpush2.msra.mxu0 0.0
    %955 = vmatprep.subr.mxu0 0.0
    %956 = vmatpush2.msra.mxu0 0.0
    %957 = vmatprep.subr.mxu0 0.0
    %958 = vmatpush2.msra.mxu0 0.0
    %959 = vmatprep.subr.mxu0 0.0
    %960 = vmatpush2.msra.mxu0 0.0
    %961 = vmatprep.mubr.f32.mxu0 0.0
    %962 = vmatmul.mubr.f32.gmra.mxu0 %v891
    %v963 = vpop.f32.mrf.mxu0
    %v964 = vadd.f32 0.0, %v963
    %v965 = vpop.f32.mrf.mxu0
    %v966 = vadd.f32 0.0, %v965
    %967 = vdwg.mxu0
    %968 = vmatprep.subr.mxu0 %v558
    %969 = vmatpush1.msra.mxu0 %v557
    %970 = vmatprep.subr.mxu0 %v554
    %971 = vmatpush1.msra.mxu0 %v553
    %972 = vmatprep.subr.mxu0 %v550
    %973 = vmatpush1.msra.mxu0 %v549
    %974 = vmatprep.subr.mxu0 %v546
    %975 = vmatpush1.msra.mxu0 %v545
    %976 = vmatprep.subr.mxu0 %v542
    %977 = vmatpush1.msra.mxu0 %v541
    %978 = vmatprep.subr.mxu0 %v538
    %979 = vmatpush1.msra.mxu0 %v537
    %980 = vmatprep.subr.mxu0 %v534
    %981 = vmatpush1.msra.mxu0 %v533
    %982 = vmatprep.subr.mxu0 %v530
    %983 = vmatpush1.msra.mxu0 %v529
    %984 = vmatprep.subr.mxu0 %v526
    %985 = vmatpush1.msra.mxu0 %v525
    %986 = vmatprep.subr.mxu0 %v522
    %987 = vmatpush1.msra.mxu0 %v521
    %988 = vmatprep.subr.mxu0 %v518
    %989 = vmatpush1.msra.mxu0 %v517
    %990 = vmatprep.subr.mxu0 %v514
    %991 = vmatpush1.msra.mxu0 %v513
    %992 = vmatprep.subr.mxu0 %v510
    %993 = vmatpush1.msra.mxu0 %v509
    %994 = vmatprep.subr.mxu0 %v506
    %995 = vmatpush1.msra.mxu0 %v505
    %996 = vmatprep.subr.mxu0 %v502
    %997 = vmatpush1.msra.mxu0 %v501
    %998 = vmatprep.subr.mxu0 %v498
    %999 = vmatpush1.msra.mxu0 %v497
    %1000 = vmatprep.subr.mxu0 0.0
    %1001 = vmatpush2.msra.mxu0 0.0
    %1002 = vmatprep.subr.mxu0 0.0
    %1003 = vmatpush2.msra.mxu0 0.0
    %1004 = vmatprep.subr.mxu0 0.0
    %1005 = vmatpush2.msra.mxu0 0.0
    %1006 = vmatprep.subr.mxu0 0.0
    %1007 = vmatpush2.msra.mxu0 0.0
    %1008 = vmatprep.subr.mxu0 0.0
    %1009 = vmatpush2.msra.mxu0 0.0
    %1010 = vmatprep.subr.mxu0 0.0
    %1011 = vmatpush2.msra.mxu0 0.0
    %1012 = vmatprep.subr.mxu0 0.0
    %1013 = vmatpush2.msra.mxu0 0.0
    %1014 = vmatprep.subr.mxu0 0.0
    %1015 = vmatpush2.msra.mxu0 0.0
    %1016 = vmatprep.subr.mxu0 0.0
    %1017 = vmatpush2.msra.mxu0 0.0
    %1018 = vmatprep.subr.mxu0 0.0
    %1019 = vmatpush2.msra.mxu0 0.0
    %1020 = vmatprep.subr.mxu0 0.0
    %1021 = vmatpush2.msra.mxu0 0.0
    %1022 = vmatprep.subr.mxu0 0.0
    %1023 = vmatpush2.msra.mxu0 0.0
    %1024 = vmatprep.subr.mxu0 0.0
    %1025 = vmatpush2.msra.mxu0 0.0
    %1026 = vmatprep.subr.mxu0 0.0
    %1027 = vmatpush2.msra.mxu0 0.0
    %1028 = vmatprep.subr.mxu0 0.0
    %1029 = vmatpush2.msra.mxu0 0.0
    %1030 = vmatprep.subr.mxu0 0.0
    %1031 = vmatpush2.msra.mxu0 0.0
    %1032 = vmatprep.mubr.f32.mxu0 0.0
    %1033 = vmatmul.mubr.f32.gmra.mxu0 %v891
    %v1034 = vpop.f32.mrf.mxu0
    %v1035 = vadd.f32 0.0, %v1034
    %v1036 = vpop.f32.mrf.mxu0
    %v1037 = vadd.f32 0.0, %v1036
    %1038 = vdwg.mxu0
    %v1039 = vadd.f32 %v893, %v964
    %v1040 = vadd.f32 %v894, %v966
    %v1041 = vadd.f32 %v895, %v1035
    %v1042 = vadd.f32 %v896, %v1037
    %v1043 = vmul.f32 %v1039, 0.5
    %v1044 = vmul.f32 %v1040, 0.5
    %v1045 = vmul.f32 %v1041, 0.5
    %v1046 = vtanh.pop %v1043
    %v1047 = vtanh.pop %v1044
    %v1048 = vtanh.pop %v1045
    %v1049 = vmul.f32 %v1046, 0.5
    %v1050 = vmul.f32 %v1047, 0.5
    %v1051 = vmul.f32 %v1048, 0.5
    %v1052 = vadd.f32 %v1049, 0.5
    %v1053 = vadd.f32 %v1050, 0.5
    %v1054 = vadd.f32 %v1051, 0.5
    %v1055 = vtanh.pop %v1042
    %v1056 = vmul.f32 %v1053, %v889
    %v1057 = vmul.f32 %v1052, %v1055
    %v1058 = vadd.f32 %v1056, %v1057
    %v1059 = vtanh.pop %v1058
    %v1060 = vmul.f32 %v1054, %v1059
    %s1061 = scalar_lea.vmem [#allocation2], 96
    %v1062 = vld [vmem:[%s1061] sm:$0xff]
    %v1063 = vld [vmem:[%s1061 + $0x8] sm:$0xff]
    %v1064 = vld [vmem:[%s1061 + $0x10] sm:$0xff]
    %v1065 = vld [vmem:[%s1061 + $0x18] sm:$0xff]
    %1066 = vmatprep.subr.mxu0 %v556
    %1067 = vmatpush1.msra.mxu0 %v555
    %1068 = vmatprep.subr.mxu0 %v552
    %1069 = vmatpush1.msra.mxu0 %v551
    %1070 = vmatprep.subr.mxu0 %v548
    %1071 = vmatpush1.msra.mxu0 %v547
    %1072 = vmatprep.subr.mxu0 %v544
    %1073 = vmatpush1.msra.mxu0 %v543
    %1074 = vmatprep.subr.mxu0 %v540
    %1075 = vmatpush1.msra.mxu0 %v539
    %1076 = vmatprep.subr.mxu0 %v536
    %1077 = vmatpush1.msra.mxu0 %v535
    %1078 = vmatprep.subr.mxu0 %v532
    %1079 = vmatpush1.msra.mxu0 %v531
    %1080 = vmatprep.subr.mxu0 %v528
    %1081 = vmatpush1.msra.mxu0 %v527
    %1082 = vmatprep.subr.mxu0 %v524
    %1083 = vmatpush1.msra.mxu0 %v523
    %1084 = vmatprep.subr.mxu0 %v520
    %1085 = vmatpush1.msra.mxu0 %v519
    %1086 = vmatprep.subr.mxu0 %v516
    %1087 = vmatpush1.msra.mxu0 %v515
    %1088 = vmatprep.subr.mxu0 %v512
    %1089 = vmatpush1.msra.mxu0 %v511
    %1090 = vmatprep.subr.mxu0 %v508
    %1091 = vmatpush1.msra.mxu0 %v507
    %1092 = vmatprep.subr.mxu0 %v504
    %1093 = vmatpush1.msra.mxu0 %v503
    %1094 = vmatprep.subr.mxu0 %v500
    %1095 = vmatpush1.msra.mxu0 %v499
    %1096 = vmatprep.subr.mxu0 %v496
    %1097 = vmatpush1.msra.mxu0 %v495
    %1098 = vmatprep.subr.mxu0 0.0
    %1099 = vmatpush2.msra.mxu0 0.0
    %1100 = vmatprep.subr.mxu0 0.0
    %1101 = vmatpush2.msra.mxu0 0.0
    %1102 = vmatprep.subr.mxu0 0.0
    %1103 = vmatpush2.msra.mxu0 0.0
    %1104 = vmatprep.subr.mxu0 0.0
    %1105 = vmatpush2.msra.mxu0 0.0
    %1106 = vmatprep.subr.mxu0 0.0
    %1107 = vmatpush2.msra.mxu0 0.0
    %1108 = vmatprep.subr.mxu0 0.0
    %1109 = vmatpush2.msra.mxu0 0.0
    %1110 = vmatprep.subr.mxu0 0.0
    %1111 = vmatpush2.msra.mxu0 0.0
    %1112 = vmatprep.subr.mxu0 0.0
    %1113 = vmatpush2.msra.mxu0 0.0
    %1114 = vmatprep.subr.mxu0 0.0
    %1115 = vmatpush2.msra.mxu0 0.0
    %1116 = vmatprep.subr.mxu0 0.0
    %1117 = vmatpush2.msra.mxu0 0.0
    %1118 = vmatprep.subr.mxu0 0.0
    %1119 = vmatpush2.msra.mxu0 0.0
    %1120 = vmatprep.subr.mxu0 0.0
    %1121 = vmatpush2.msra.mxu0 0.0
    %1122 = vmatprep.subr.mxu0 0.0
    %1123 = vmatpush2.msra.mxu0 0.0
    %1124 = vmatprep.subr.mxu0 0.0
    %1125 = vmatpush2.msra.mxu0 0.0
    %1126 = vmatprep.subr.mxu0 0.0
    %1127 = vmatpush2.msra.mxu0 0.0
    %1128 = vmatprep.subr.mxu0 0.0
    %1129 = vmatpush2.msra.mxu0 0.0
    %1130 = vmatprep.mubr.f32.mxu0 0.0
    %1131 = vmatmul.mubr.f32.gmra.mxu0 %v1060
    %v1132 = vpop.f32.mrf.mxu0
    %v1133 = vadd.f32 0.0, %v1132
    %v1134 = vpop.f32.mrf.mxu0
    %v1135 = vadd.f32 0.0, %v1134
    %1136 = vdwg.mxu0
    %1137 = vmatprep.subr.mxu0 %v558
    %1138 = vmatpush1.msra.mxu0 %v557
    %1139 = vmatprep.subr.mxu0 %v554
    %1140 = vmatpush1.msra.mxu0 %v553
    %1141 = vmatprep.subr.mxu0 %v550
    %1142 = vmatpush1.msra.mxu0 %v549
    %1143 = vmatprep.subr.mxu0 %v546
    %1144 = vmatpush1.msra.mxu0 %v545
    %1145 = vmatprep.subr.mxu0 %v542
    %1146 = vmatpush1.msra.mxu0 %v541
    %1147 = vmatprep.subr.mxu0 %v538
    %1148 = vmatpush1.msra.mxu0 %v537
    %1149 = vmatprep.subr.mxu0 %v534
    %1150 = vmatpush1.msra.mxu0 %v533
    %1151 = vmatprep.subr.mxu0 %v530
    %1152 = vmatpush1.msra.mxu0 %v529
    %1153 = vmatprep.subr.mxu0 %v526
    %1154 = vmatpush1.msra.mxu0 %v525
    %1155 = vmatprep.subr.mxu0 %v522
    %1156 = vmatpush1.msra.mxu0 %v521
    %1157 = vmatprep.subr.mxu0 %v518
    %1158 = vmatpush1.msra.mxu0 %v517
    %1159 = vmatprep.subr.mxu0 %v514
    %1160 = vmatpush1.msra.mxu0 %v513
    %1161 = vmatprep.subr.mxu0 %v510
    %1162 = vmatpush1.msra.mxu0 %v509
    %1163 = vmatprep.subr.mxu0 %v506
    %1164 = vmatpush1.msra.mxu0 %v505
    %1165 = vmatprep.subr.mxu0 %v502
    %1166 = vmatpush1.msra.mxu0 %v501
    %1167 = vmatprep.subr.mxu0 %v498
    %1168 = vmatpush1.msra.mxu0 %v497
    %1169 = vmatprep.subr.mxu0 0.0
    %1170 = vmatpush2.msra.mxu0 0.0
    %1171 = vmatprep.subr.mxu0 0.0
    %1172 = vmatpush2.msra.mxu0 0.0
    %1173 = vmatprep.subr.mxu0 0.0
    %1174 = vmatpush2.msra.mxu0 0.0
    %1175 = vmatprep.subr.mxu0 0.0
    %1176 = vmatpush2.msra.mxu0 0.0
    %1177 = vmatprep.subr.mxu0 0.0
    %1178 = vmatpush2.msra.mxu0 0.0
    %1179 = vmatprep.subr.mxu0 0.0
    %1180 = vmatpush2.msra.mxu0 0.0
    %1181 = vmatprep.subr.mxu0 0.0
    %1182 = vmatpush2.msra.mxu0 0.0
    %1183 = vmatprep.subr.mxu0 0.0
    %1184 = vmatpush2.msra.mxu0 0.0
    %1185 = vmatprep.subr.mxu0 0.0
    %1186 = vmatpush2.msra.mxu0 0.0
    %1187 = vmatprep.subr.mxu0 0.0
    %1188 = vmatpush2.msra.mxu0 0.0
    %1189 = vmatprep.subr.mxu0 0.0
    %1190 = vmatpush2.msra.mxu0 0.0
    %1191 = vmatprep.subr.mxu0 0.0
    %1192 = vmatpush2.msra.mxu0 0.0
    %1193 = vmatprep.subr.mxu0 0.0
    %1194 = vmatpush2.msra.mxu0 0.0
    %1195 = vmatprep.subr.mxu0 0.0
    %1196 = vmatpush2.msra.mxu0 0.0
    %1197 = vmatprep.subr.mxu0 0.0
    %1198 = vmatpush2.msra.mxu0 0.0
    %1199 = vmatprep.subr.mxu0 0.0
    %1200 = vmatpush2.msra.mxu0 0.0
    %1201 = vmatprep.mubr.f32.mxu0 0.0
    %1202 = vmatmul.mubr.f32.gmra.mxu0 %v1060
    %v1203 = vpop.f32.mrf.mxu0
    %v1204 = vadd.f32 0.0, %v1203
    %v1205 = vpop.f32.mrf.mxu0
    %v1206 = vadd.f32 0.0, %v1205
    %1207 = vdwg.mxu0
    %v1208 = vadd.f32 %v1062, %v1133
    %v1209 = vadd.f32 %v1063, %v1135
    %v1210 = vadd.f32 %v1064, %v1204
    %v1211 = vadd.f32 %v1065, %v1206
    %v1212 = vmul.f32 %v1208, 0.5
    %v1213 = vmul.f32 %v1209, 0.5
    %v1214 = vmul.f32 %v1210, 0.5
    %v1215 = vtanh.pop %v1212
    %v1216 = vtanh.pop %v1213
    %v1217 = vtanh.pop %v1214
    %v1218 = vmul.f32 %v1215, 0.5
    %v1219 = vmul.f32 %v1216, 0.5
    %v1220 = vmul.f32 %v1217, 0.5
    %v1221 = vadd.f32 %v1218, 0.5
    %v1222 = vadd.f32 %v1219, 0.5
    %v1223 = vadd.f32 %v1220, 0.5
    %v1224 = vtanh.pop %v1211
    %v1225 = vmul.f32 %v1222, %v1058
    %v1226 = vmul.f32 %v1221, %v1224
    %v1227 = vadd.f32 %v1225, %v1226
    %v1228 = vtanh.pop %v1227
    %v1229 = vmul.f32 %v1223, %v1228
    %s1230 = scalar_lea.vmem [#allocation2], 128
    %v1231 = vld [vmem:[%s1230] sm:$0xff]
    %v1232 = vld [vmem:[%s1230 + $0x8] sm:$0xff]
    %v1233 = vld [vmem:[%s1230 + $0x10] sm:$0xff]
    %v1234 = vld [vmem:[%s1230 + $0x18] sm:$0xff]
    %1235 = vmatprep.subr.mxu0 %v556
    %1236 = vmatpush1.msra.mxu0 %v555
    %1237 = vmatprep.subr.mxu0 %v552
    %1238 = vmatpush1.msra.mxu0 %v551
    %1239 = vmatprep.subr.mxu0 %v548
    %1240 = vmatpush1.msra.mxu0 %v547
    %1241 = vmatprep.subr.mxu0 %v544
    %1242 = vmatpush1.msra.mxu0 %v543
    %1243 = vmatprep.subr.mxu0 %v540
    %1244 = vmatpush1.msra.mxu0 %v539
    %1245 = vmatprep.subr.mxu0 %v536
    %1246 = vmatpush1.msra.mxu0 %v535
    %1247 = vmatprep.subr.mxu0 %v532
    %1248 = vmatpush1.msra.mxu0 %v531
    %1249 = vmatprep.subr.mxu0 %v528
    %1250 = vmatpush1.msra.mxu0 %v527
    %1251 = vmatprep.subr.mxu0 %v524
    %1252 = vmatpush1.msra.mxu0 %v523
    %1253 = vmatprep.subr.mxu0 %v520
    %1254 = vmatpush1.msra.mxu0 %v519
    %1255 = vmatprep.subr.mxu0 %v516
    %1256 = vmatpush1.msra.mxu0 %v515
    %1257 = vmatprep.subr.mxu0 %v512
    %1258 = vmatpush1.msra.mxu0 %v511
    %1259 = vmatprep.subr.mxu0 %v508
    %1260 = vmatpush1.msra.mxu0 %v507
    %1261 = vmatprep.subr.mxu0 %v504
    %1262 = vmatpush1.msra.mxu0 %v503
    %1263 = vmatprep.subr.mxu0 %v500
    %1264 = vmatpush1.msra.mxu0 %v499
    %1265 = vmatprep.subr.mxu0 %v496
    %1266 = vmatpush1.msra.mxu0 %v495
    %1267 = vmatprep.subr.mxu0 0.0
    %1268 = vmatpush2.msra.mxu0 0.0
    %1269 = vmatprep.subr.mxu0 0.0
    %1270 = vmatpush2.msra.mxu0 0.0
    %1271 = vmatprep.subr.mxu0 0.0
    %1272 = vmatpush2.msra.mxu0 0.0
    %1273 = vmatprep.subr.mxu0 0.0
    %1274 = vmatpush2.msra.mxu0 0.0
    %1275 = vmatprep.subr.mxu0 0.0
    %1276 = vmatpush2.msra.mxu0 0.0
    %1277 = vmatprep.subr.mxu0 0.0
    %1278 = vmatpush2.msra.mxu0 0.0
    %1279 = vmatprep.subr.mxu0 0.0
    %1280 = vmatpush2.msra.mxu0 0.0
    %1281 = vmatprep.subr.mxu0 0.0
    %1282 = vmatpush2.msra.mxu0 0.0
    %1283 = vmatprep.subr.mxu0 0.0
    %1284 = vmatpush2.msra.mxu0 0.0
    %1285 = vmatprep.subr.mxu0 0.0
    %1286 = vmatpush2.msra.mxu0 0.0
    %1287 = vmatprep.subr.mxu0 0.0
    %1288 = vmatpush2.msra.mxu0 0.0
    %1289 = vmatprep.subr.mxu0 0.0
    %1290 = vmatpush2.msra.mxu0 0.0
    %1291 = vmatprep.subr.mxu0 0.0
    %1292 = vmatpush2.msra.mxu0 0.0
    %1293 = vmatprep.subr.mxu0 0.0
    %1294 = vmatpush2.msra.mxu0 0.0
    %1295 = vmatprep.subr.mxu0 0.0
    %1296 = vmatpush2.msra.mxu0 0.0
    %1297 = vmatprep.subr.mxu0 0.0
    %1298 = vmatpush2.msra.mxu0 0.0
    %1299 = vmatprep.mubr.f32.mxu0 0.0
    %1300 = vmatmul.mubr.f32.gmra.mxu0 %v1229
    %v1301 = vpop.f32.mrf.mxu0
    %v1302 = vadd.f32 0.0, %v1301
    %v1303 = vpop.f32.mrf.mxu0
    %v1304 = vadd.f32 0.0, %v1303
    %1305 = vdwg.mxu0
    %1306 = vmatprep.subr.mxu0 %v558
    %1307 = vmatpush1.msra.mxu0 %v557
    %1308 = vmatprep.subr.mxu0 %v554
    %1309 = vmatpush1.msra.mxu0 %v553
    %1310 = vmatprep.subr.mxu0 %v550
    %1311 = vmatpush1.msra.mxu0 %v549
    %1312 = vmatprep.subr.mxu0 %v546
    %1313 = vmatpush1.msra.mxu0 %v545
    %1314 = vmatprep.subr.mxu0 %v542
    %1315 = vmatpush1.msra.mxu0 %v541
    %1316 = vmatprep.subr.mxu0 %v538
    %1317 = vmatpush1.msra.mxu0 %v537
    %1318 = vmatprep.subr.mxu0 %v534
    %1319 = vmatpush1.msra.mxu0 %v533
    %1320 = vmatprep.subr.mxu0 %v530
    %1321 = vmatpush1.msra.mxu0 %v529
    %1322 = vmatprep.subr.mxu0 %v526
    %1323 = vmatpush1.msra.mxu0 %v525
    %1324 = vmatprep.subr.mxu0 %v522
    %1325 = vmatpush1.msra.mxu0 %v521
    %1326 = vmatprep.subr.mxu0 %v518
    %1327 = vmatpush1.msra.mxu0 %v517
    %1328 = vmatprep.subr.mxu0 %v514
    %1329 = vmatpush1.msra.mxu0 %v513
    %1330 = vmatprep.subr.mxu0 %v510
    %1331 = vmatpush1.msra.mxu0 %v509
    %1332 = vmatprep.subr.mxu0 %v506
    %1333 = vmatpush1.msra.mxu0 %v505
    %1334 = vmatprep.subr.mxu0 %v502
    %1335 = vmatpush1.msra.mxu0 %v501
    %1336 = vmatprep.subr.mxu0 %v498
    %1337 = vmatpush1.msra.mxu0 %v497
    %1338 = vmatprep.subr.mxu0 0.0
    %1339 = vmatpush2.msra.mxu0 0.0
    %1340 = vmatprep.subr.mxu0 0.0
    %1341 = vmatpush2.msra.mxu0 0.0
    %1342 = vmatprep.subr.mxu0 0.0
    %1343 = vmatpush2.msra.mxu0 0.0
    %1344 = vmatprep.subr.mxu0 0.0
    %1345 = vmatpush2.msra.mxu0 0.0
    %1346 = vmatprep.subr.mxu0 0.0
    %1347 = vmatpush2.msra.mxu0 0.0
    %1348 = vmatprep.subr.mxu0 0.0
    %1349 = vmatpush2.msra.mxu0 0.0
    %1350 = vmatprep.subr.mxu0 0.0
    %1351 = vmatpush2.msra.mxu0 0.0
    %1352 = vmatprep.subr.mxu0 0.0
    %1353 = vmatpush2.msra.mxu0 0.0
    %1354 = vmatprep.subr.mxu0 0.0
    %1355 = vmatpush2.msra.mxu0 0.0
    %1356 = vmatprep.subr.mxu0 0.0
    %1357 = vmatpush2.msra.mxu0 0.0
    %1358 = vmatprep.subr.mxu0 0.0
    %1359 = vmatpush2.msra.mxu0 0.0
    %1360 = vmatprep.subr.mxu0 0.0
    %1361 = vmatpush2.msra.mxu0 0.0
    %1362 = vmatprep.subr.mxu0 0.0
    %1363 = vmatpush2.msra.mxu0 0.0
    %1364 = vmatprep.subr.mxu0 0.0
    %1365 = vmatpush2.msra.mxu0 0.0
    %1366 = vmatprep.subr.mxu0 0.0
    %1367 = vmatpush2.msra.mxu0 0.0
    %1368 = vmatprep.subr.mxu0 0.0
    %1369 = vmatpush2.msra.mxu0 0.0
    %1370 = vmatprep.mubr.f32.mxu0 0.0
    %1371 = vmatmul.mubr.f32.gmra.mxu0 %v1229
    %v1372 = vpop.f32.mrf.mxu0
    %v1373 = vadd.f32 0.0, %v1372
    %v1374 = vpop.f32.mrf.mxu0
    %v1375 = vadd.f32 0.0, %v1374
    %1376 = vdwg.mxu0
    %v1377 = vadd.f32 %v1231, %v1302
    %v1378 = vadd.f32 %v1232, %v1304
    %v1379 = vadd.f32 %v1233, %v1373
    %v1380 = vadd.f32 %v1234, %v1375
    %v1381 = vmul.f32 %v1377, 0.5
    %v1382 = vmul.f32 %v1378, 0.5
    %v1383 = vmul.f32 %v1379, 0.5
    %v1384 = vtanh.pop %v1381
    %v1385 = vtanh.pop %v1382
    %v1386 = vtanh.pop %v1383
    %v1387 = vmul.f32 %v1384, 0.5
    %v1388 = vmul.f32 %v1385, 0.5
    %v1389 = vmul.f32 %v1386, 0.5
    %v1390 = vadd.f32 %v1387, 0.5
    %v1391 = vadd.f32 %v1388, 0.5
    %v1392 = vadd.f32 %v1389, 0.5
    %v1393 = vtanh.pop %v1380
    %v1394 = vmul.f32 %v1391, %v1227
    %v1395 = vmul.f32 %v1390, %v1393
    %v1396 = vadd.f32 %v1394, %v1395
    %v1397 = vtanh.pop %v1396
    %v1398 = vmul.f32 %v1392, %v1397
    %s1399 = scalar_lea.vmem [#allocation2], 160
    %v1400 = vld [vmem:[%s1399] sm:$0xff]
    %v1401 = vld [vmem:[%s1399 + $0x8] sm:$0xff]
    %v1402 = vld [vmem:[%s1399 + $0x10] sm:$0xff]
    %v1403 = vld [vmem:[%s1399 + $0x18] sm:$0xff]
    %1404 = vmatprep.subr.mxu0 %v556
    %1405 = vmatpush1.msra.mxu0 %v555
    %1406 = vmatprep.subr.mxu0 %v552
    %1407 = vmatpush1.msra.mxu0 %v551
    %1408 = vmatprep.subr.mxu0 %v548
    %1409 = vmatpush1.msra.mxu0 %v547
    %1410 = vmatprep.subr.mxu0 %v544
    %1411 = vmatpush1.msra.mxu0 %v543
    %1412 = vmatprep.subr.mxu0 %v540
    %1413 = vmatpush1.msra.mxu0 %v539
    %1414 = vmatprep.subr.mxu0 %v536
    %1415 = vmatpush1.msra.mxu0 %v535
    %1416 = vmatprep.subr.mxu0 %v532
    %1417 = vmatpush1.msra.mxu0 %v531
    %1418 = vmatprep.subr.mxu0 %v528
    %1419 = vmatpush1.msra.mxu0 %v527
    %1420 = vmatprep.subr.mxu0 %v524
    %1421 = vmatpush1.msra.mxu0 %v523
    %1422 = vmatprep.subr.mxu0 %v520
    %1423 = vmatpush1.msra.mxu0 %v519
    %1424 = vmatprep.subr.mxu0 %v516
    %1425 = vmatpush1.msra.mxu0 %v515
    %1426 = vmatprep.subr.mxu0 %v512
    %1427 = vmatpush1.msra.mxu0 %v511
    %1428 = vmatprep.subr.mxu0 %v508
    %1429 = vmatpush1.msra.mxu0 %v507
    %1430 = vmatprep.subr.mxu0 %v504
    %1431 = vmatpush1.msra.mxu0 %v503
    %1432 = vmatprep.subr.mxu0 %v500
    %1433 = vmatpush1.msra.mxu0 %v499
    %1434 = vmatprep.subr.mxu0 %v496
    %1435 = vmatpush1.msra.mxu0 %v495
    %1436 = vmatprep.subr.mxu0 0.0
    %1437 = vmatpush2.msra.mxu0 0.0
    %1438 = vmatprep.subr.mxu0 0.0
    %1439 = vmatpush2.msra.mxu0 0.0
    %1440 = vmatprep.subr.mxu0 0.0
    %1441 = vmatpush2.msra.mxu0 0.0
    %1442 = vmatprep.subr.mxu0 0.0
    %1443 = vmatpush2.msra.mxu0 0.0
    %1444 = vmatprep.subr.mxu0 0.0
    %1445 = vmatpush2.msra.mxu0 0.0
    %1446 = vmatprep.subr.mxu0 0.0
    %1447 = vmatpush2.msra.mxu0 0.0
    %1448 = vmatprep.subr.mxu0 0.0
    %1449 = vmatpush2.msra.mxu0 0.0
    %1450 = vmatprep.subr.mxu0 0.0
    %1451 = vmatpush2.msra.mxu0 0.0
    %1452 = vmatprep.subr.mxu0 0.0
    %1453 = vmatpush2.msra.mxu0 0.0
    %1454 = vmatprep.subr.mxu0 0.0
    %1455 = vmatpush2.msra.mxu0 0.0
    %1456 = vmatprep.subr.mxu0 0.0
    %1457 = vmatpush2.msra.mxu0 0.0
    %1458 = vmatprep.subr.mxu0 0.0
    %1459 = vmatpush2.msra.mxu0 0.0
    %1460 = vmatprep.subr.mxu0 0.0
    %1461 = vmatpush2.msra.mxu0 0.0
    %1462 = vmatprep.subr.mxu0 0.0
    %1463 = vmatpush2.msra.mxu0 0.0
    %1464 = vmatprep.subr.mxu0 0.0
    %1465 = vmatpush2.msra.mxu0 0.0
    %1466 = vmatprep.subr.mxu0 0.0
    %1467 = vmatpush2.msra.mxu0 0.0
    %1468 = vmatprep.mubr.f32.mxu0 0.0
    %1469 = vmatmul.mubr.f32.gmra.mxu0 %v1398
    %v1470 = vpop.f32.mrf.mxu0
    %v1471 = vadd.f32 0.0, %v1470
    %v1472 = vpop.f32.mrf.mxu0
    %v1473 = vadd.f32 0.0, %v1472
    %1474 = vdwg.mxu0
    %1475 = vmatprep.subr.mxu0 %v558
    %1476 = vmatpush1.msra.mxu0 %v557
    %1477 = vmatprep.subr.mxu0 %v554
    %1478 = vmatpush1.msra.mxu0 %v553
    %1479 = vmatprep.subr.mxu0 %v550
    %1480 = vmatpush1.msra.mxu0 %v549
    %1481 = vmatprep.subr.mxu0 %v546
    %1482 = vmatpush1.msra.mxu0 %v545
    %1483 = vmatprep.subr.mxu0 %v542
    %1484 = vmatpush1.msra.mxu0 %v541
    %1485 = vmatprep.subr.mxu0 %v538
    %1486 = vmatpush1.msra.mxu0 %v537
    %1487 = vmatprep.subr.mxu0 %v534
    %1488 = vmatpush1.msra.mxu0 %v533
    %1489 = vmatprep.subr.mxu0 %v530
    %1490 = vmatpush1.msra.mxu0 %v529
    %1491 = vmatprep.subr.mxu0 %v526
    %1492 = vmatpush1.msra.mxu0 %v525
    %1493 = vmatprep.subr.mxu0 %v522
    %1494 = vmatpush1.msra.mxu0 %v521
    %1495 = vmatprep.subr.mxu0 %v518
    %1496 = vmatpush1.msra.mxu0 %v517
    %1497 = vmatprep.subr.mxu0 %v514
    %1498 = vmatpush1.msra.mxu0 %v513
    %1499 = vmatprep.subr.mxu0 %v510
    %1500 = vmatpush1.msra.mxu0 %v509
    %1501 = vmatprep.subr.mxu0 %v506
    %1502 = vmatpush1.msra.mxu0 %v505
    %1503 = vmatprep.subr.mxu0 %v502
    %1504 = vmatpush1.msra.mxu0 %v501
    %1505 = vmatprep.subr.mxu0 %v498
    %1506 = vmatpush1.msra.mxu0 %v497
    %1507 = vmatprep.subr.mxu0 0.0
    %1508 = vmatpush2.msra.mxu0 0.0
    %1509 = vmatprep.subr.mxu0 0.0
    %1510 = vmatpush2.msra.mxu0 0.0
    %1511 = vmatprep.subr.mxu0 0.0
    %1512 = vmatpush2.msra.mxu0 0.0
    %1513 = vmatprep.subr.mxu0 0.0
    %1514 = vmatpush2.msra.mxu0 0.0
    %1515 = vmatprep.subr.mxu0 0.0
    %1516 = vmatpush2.msra.mxu0 0.0
    %1517 = vmatprep.subr.mxu0 0.0
    %1518 = vmatpush2.msra.mxu0 0.0
    %1519 = vmatprep.subr.mxu0 0.0
    %1520 = vmatpush2.msra.mxu0 0.0
    %1521 = vmatprep.subr.mxu0 0.0
    %1522 = vmatpush2.msra.mxu0 0.0
    %1523 = vmatprep.subr.mxu0 0.0
    %1524 = vmatpush2.msra.mxu0 0.0
    %1525 = vmatprep.subr.mxu0 0.0
    %1526 = vmatpush2.msra.mxu0 0.0
    %1527 = vmatprep.subr.mxu0 0.0
    %1528 = vmatpush2.msra.mxu0 0.0
    %1529 = vmatprep.subr.mxu0 0.0
    %1530 = vmatpush2.msra.mxu0 0.0
    %1531 = vmatprep.subr.mxu0 0.0
    %1532 = vmatpush2.msra.mxu0 0.0
    %1533 = vmatprep.subr.mxu0 0.0
    %1534 = vmatpush2.msra.mxu0 0.0
    %1535 = vmatprep.subr.mxu0 0.0
    %1536 = vmatpush2.msra.mxu0 0.0
    %1537 = vmatprep.subr.mxu0 0.0
    %1538 = vmatpush2.msra.mxu0 0.0
    %1539 = vmatprep.mubr.f32.mxu0 0.0
    %1540 = vmatmul.mubr.f32.gmra.mxu0 %v1398
    %v1541 = vpop.f32.mrf.mxu0
    %v1542 = vadd.f32 0.0, %v1541
    %v1543 = vpop.f32.mrf.mxu0
    %v1544 = vadd.f32 0.0, %v1543
    %1545 = vdwg.mxu0
    %v1546 = vadd.f32 %v1400, %v1471
    %v1547 = vadd.f32 %v1401, %v1473
    %v1548 = vadd.f32 %v1402, %v1542
    %v1549 = vadd.f32 %v1403, %v1544
    %v1550 = vmul.f32 %v1546, 0.5
    %v1551 = vmul.f32 %v1547, 0.5
    %v1552 = vmul.f32 %v1548, 0.5
    %v1553 = vtanh.pop %v1550
    %v1554 = vtanh.pop %v1551
    %v1555 = vtanh.pop %v1552
    %v1556 = vmul.f32 %v1553, 0.5
    %v1557 = vmul.f32 %v1554, 0.5
    %v1558 = vmul.f32 %v1555, 0.5
    %v1559 = vadd.f32 %v1556, 0.5
    %v1560 = vadd.f32 %v1557, 0.5
    %v1561 = vadd.f32 %v1558, 0.5
    %v1562 = vtanh.pop %v1549
    %v1563 = vmul.f32 %v1560, %v1396
    %v1564 = vmul.f32 %v1559, %v1562
    %v1565 = vadd.f32 %v1563, %v1564
    %v1566 = vtanh.pop %v1565
    %v1567 = vmul.f32 %v1561, %v1566
    %s1568 = scalar_lea.vmem [#allocation2], 192
    %v1569 = vld [vmem:[%s1568] sm:$0xff]
    %v1570 = vld [vmem:[%s1568 + $0x8] sm:$0xff]
    %v1571 = vld [vmem:[%s1568 + $0x10] sm:$0xff]
    %v1572 = vld [vmem:[%s1568 + $0x18] sm:$0xff]
    %1573 = vmatprep.subr.mxu0 %v556
    %1574 = vmatpush1.msra.mxu0 %v555
    %1575 = vmatprep.subr.mxu0 %v552
    %1576 = vmatpush1.msra.mxu0 %v551
    %1577 = vmatprep.subr.mxu0 %v548
    %1578 = vmatpush1.msra.mxu0 %v547
    %1579 = vmatprep.subr.mxu0 %v544
    %1580 = vmatpush1.msra.mxu0 %v543
    %1581 = vmatprep.subr.mxu0 %v540
    %1582 = vmatpush1.msra.mxu0 %v539
    %1583 = vmatprep.subr.mxu0 %v536
    %1584 = vmatpush1.msra.mxu0 %v535
    %1585 = vmatprep.subr.mxu0 %v532
    %1586 = vmatpush1.msra.mxu0 %v531
    %1587 = vmatprep.subr.mxu0 %v528
    %1588 = vmatpush1.msra.mxu0 %v527
    %1589 = vmatprep.subr.mxu0 %v524
    %1590 = vmatpush1.msra.mxu0 %v523
    %1591 = vmatprep.subr.mxu0 %v520
    %1592 = vmatpush1.msra.mxu0 %v519
    %1593 = vmatprep.subr.mxu0 %v516
    %1594 = vmatpush1.msra.mxu0 %v515
    %1595 = vmatprep.subr.mxu0 %v512
    %1596 = vmatpush1.msra.mxu0 %v511
    %1597 = vmatprep.subr.mxu0 %v508
    %1598 = vmatpush1.msra.mxu0 %v507
    %1599 = vmatprep.subr.mxu0 %v504
    %1600 = vmatpush1.msra.mxu0 %v503
    %1601 = vmatprep.subr.mxu0 %v500
    %1602 = vmatpush1.msra.mxu0 %v499
    %1603 = vmatprep.subr.mxu0 %v496
    %1604 = vmatpush1.msra.mxu0 %v495
    %1605 = vmatprep.subr.mxu0 0.0
    %1606 = vmatpush2.msra.mxu0 0.0
    %1607 = vmatprep.subr.mxu0 0.0
    %1608 = vmatpush2.msra.mxu0 0.0
    %1609 = vmatprep.subr.mxu0 0.0
    %1610 = vmatpush2.msra.mxu0 0.0
    %1611 = vmatprep.subr.mxu0 0.0
    %1612 = vmatpush2.msra.mxu0 0.0
    %1613 = vmatprep.subr.mxu0 0.0
    %1614 = vmatpush2.msra.mxu0 0.0
    %1615 = vmatprep.subr.mxu0 0.0
    %1616 = vmatpush2.msra.mxu0 0.0
    %1617 = vmatprep.subr.mxu0 0.0
    %1618 = vmatpush2.msra.mxu0 0.0
    %1619 = vmatprep.subr.mxu0 0.0
    %1620 = vmatpush2.msra.mxu0 0.0
    %1621 = vmatprep.subr.mxu0 0.0
    %1622 = vmatpush2.msra.mxu0 0.0
    %1623 = vmatprep.subr.mxu0 0.0
    %1624 = vmatpush2.msra.mxu0 0.0
    %1625 = vmatprep.subr.mxu0 0.0
    %1626 = vmatpush2.msra.mxu0 0.0
    %1627 = vmatprep.subr.mxu0 0.0
    %1628 = vmatpush2.msra.mxu0 0.0
    %1629 = vmatprep.subr.mxu0 0.0
    %1630 = vmatpush2.msra.mxu0 0.0
    %1631 = vmatprep.subr.mxu0 0.0
    %1632 = vmatpush2.msra.mxu0 0.0
    %1633 = vmatprep.subr.mxu0 0.0
    %1634 = vmatpush2.msra.mxu0 0.0
    %1635 = vmatprep.subr.mxu0 0.0
    %1636 = vmatpush2.msra.mxu0 0.0
    %1637 = vmatprep.mubr.f32.mxu0 0.0
    %1638 = vmatmul.mubr.f32.gmra.mxu0 %v1567
    %v1639 = vpop.f32.mrf.mxu0
    %v1640 = vadd.f32 0.0, %v1639
    %v1641 = vpop.f32.mrf.mxu0
    %v1642 = vadd.f32 0.0, %v1641
    %1643 = vdwg.mxu0
    %1644 = vmatprep.subr.mxu0 %v558
    %1645 = vmatpush1.msra.mxu0 %v557
    %1646 = vmatprep.subr.mxu0 %v554
    %1647 = vmatpush1.msra.mxu0 %v553
    %1648 = vmatprep.subr.mxu0 %v550
    %1649 = vmatpush1.msra.mxu0 %v549
    %1650 = vmatprep.subr.mxu0 %v546
    %1651 = vmatpush1.msra.mxu0 %v545
    %1652 = vmatprep.subr.mxu0 %v542
    %1653 = vmatpush1.msra.mxu0 %v541
    %1654 = vmatprep.subr.mxu0 %v538
    %1655 = vmatpush1.msra.mxu0 %v537
    %1656 = vmatprep.subr.mxu0 %v534
    %1657 = vmatpush1.msra.mxu0 %v533
    %1658 = vmatprep.subr.mxu0 %v530
    %1659 = vmatpush1.msra.mxu0 %v529
    %1660 = vmatprep.subr.mxu0 %v526
    %1661 = vmatpush1.msra.mxu0 %v525
    %1662 = vmatprep.subr.mxu0 %v522
    %1663 = vmatpush1.msra.mxu0 %v521
    %1664 = vmatprep.subr.mxu0 %v518
    %1665 = vmatpush1.msra.mxu0 %v517
    %1666 = vmatprep.subr.mxu0 %v514
    %1667 = vmatpush1.msra.mxu0 %v513
    %1668 = vmatprep.subr.mxu0 %v510
    %1669 = vmatpush1.msra.mxu0 %v509
    %1670 = vmatprep.subr.mxu0 %v506
    %1671 = vmatpush1.msra.mxu0 %v505
    %1672 = vmatprep.subr.mxu0 %v502
    %1673 = vmatpush1.msra.mxu0 %v501
    %1674 = vmatprep.subr.mxu0 %v498
    %1675 = vmatpush1.msra.mxu0 %v497
    %1676 = vmatprep.subr.mxu0 0.0
    %1677 = vmatpush2.msra.mxu0 0.0
    %1678 = vmatprep.subr.mxu0 0.0
    %1679 = vmatpush2.msra.mxu0 0.0
    %1680 = vmatprep.subr.mxu0 0.0
    %1681 = vmatpush2.msra.mxu0 0.0
    %1682 = vmatprep.subr.mxu0 0.0
    %1683 = vmatpush2.msra.mxu0 0.0
    %1684 = vmatprep.subr.mxu0 0.0
    %1685 = vmatpush2.msra.mxu0 0.0
    %1686 = vmatprep.subr.mxu0 0.0
    %1687 = vmatpush2.msra.mxu0 0.0
    %1688 = vmatprep.subr.mxu0 0.0
    %1689 = vmatpush2.msra.mxu0 0.0
    %1690 = vmatprep.subr.mxu0 0.0
    %1691 = vmatpush2.msra.mxu0 0.0
    %1692 = vmatprep.subr.mxu0 0.0
    %1693 = vmatpush2.msra.mxu0 0.0
    %1694 = vmatprep.subr.mxu0 0.0
    %1695 = vmatpush2.msra.mxu0 0.0
    %1696 = vmatprep.subr.mxu0 0.0
    %1697 = vmatpush2.msra.mxu0 0.0
    %1698 = vmatprep.subr.mxu0 0.0
    %1699 = vmatpush2.msra.mxu0 0.0
    %1700 = vmatprep.subr.mxu0 0.0
    %1701 = vmatpush2.msra.mxu0 0.0
    %1702 = vmatprep.subr.mxu0 0.0
    %1703 = vmatpush2.msra.mxu0 0.0
    %1704 = vmatprep.subr.mxu0 0.0
    %1705 = vmatpush2.msra.mxu0 0.0
    %1706 = vmatprep.subr.mxu0 0.0
    %1707 = vmatpush2.msra.mxu0 0.0
    %1708 = vmatprep.mubr.f32.mxu0 0.0
    %1709 = vmatmul.mubr.f32.gmra.mxu0 %v1567
    %v1710 = vpop.f32.mrf.mxu0
    %v1711 = vadd.f32 0.0, %v1710
    %v1712 = vpop.f32.mrf.mxu0
    %v1713 = vadd.f32 0.0, %v1712
    %1714 = vdwg.mxu0
    %v1715 = vadd.f32 %v1569, %v1640
    %v1716 = vadd.f32 %v1570, %v1642
    %v1717 = vadd.f32 %v1571, %v1711
    %v1718 = vadd.f32 %v1572, %v1713
    %v1719 = vmul.f32 %v1715, 0.5
    %v1720 = vmul.f32 %v1716, 0.5
    %v1721 = vmul.f32 %v1717, 0.5
    %v1722 = vtanh.pop %v1719
    %v1723 = vtanh.pop %v1720
    %v1724 = vtanh.pop %v1721
    %v1725 = vmul.f32 %v1722, 0.5
    %v1726 = vmul.f32 %v1723, 0.5
    %v1727 = vmul.f32 %v1724, 0.5
    %v1728 = vadd.f32 %v1725, 0.5
    %v1729 = vadd.f32 %v1726, 0.5
    %v1730 = vadd.f32 %v1727, 0.5
    %v1731 = vtanh.pop %v1718
    %v1732 = vmul.f32 %v1729, %v1565
    %v1733 = vmul.f32 %v1728, %v1731
    %v1734 = vadd.f32 %v1732, %v1733
    %v1735 = vtanh.pop %v1734
    %v1736 = vmul.f32 %v1730, %v1735
    %s1737 = scalar_lea.vmem [#allocation2], 224
    %v1738 = vld [vmem:[%s1737] sm:$0xff]
    %v1739 = vld [vmem:[%s1737 + $0x8] sm:$0xff]
    %v1740 = vld [vmem:[%s1737 + $0x10] sm:$0xff]
    %v1741 = vld [vmem:[%s1737 + $0x18] sm:$0xff]
    %1742 = vmatprep.subr.mxu0 %v556
    %1743 = vmatpush1.msra.mxu0 %v555
    %1744 = vmatprep.subr.mxu0 %v552
    %1745 = vmatpush1.msra.mxu0 %v551
    %1746 = vmatprep.subr.mxu0 %v548
    %1747 = vmatpush1.msra.mxu0 %v547
    %1748 = vmatprep.subr.mxu0 %v544
    %1749 = vmatpush1.msra.mxu0 %v543
    %1750 = vmatprep.subr.mxu0 %v540
    %1751 = vmatpush1.msra.mxu0 %v539
    %1752 = vmatprep.subr.mxu0 %v536
    %1753 = vmatpush1.msra.mxu0 %v535
    %1754 = vmatprep.subr.mxu0 %v532
    %1755 = vmatpush1.msra.mxu0 %v531
    %1756 = vmatprep.subr.mxu0 %v528
    %1757 = vmatpush1.msra.mxu0 %v527
    %1758 = vmatprep.subr.mxu0 %v524
    %1759 = vmatpush1.msra.mxu0 %v523
    %1760 = vmatprep.subr.mxu0 %v520
    %1761 = vmatpush1.msra.mxu0 %v519
    %1762 = vmatprep.subr.mxu0 %v516
    %1763 = vmatpush1.msra.mxu0 %v515
    %1764 = vmatprep.subr.mxu0 %v512
    %1765 = vmatpush1.msra.mxu0 %v511
    %1766 = vmatprep.subr.mxu0 %v508
    %1767 = vmatpush1.msra.mxu0 %v507
    %1768 = vmatprep.subr.mxu0 %v504
    %1769 = vmatpush1.msra.mxu0 %v503
    %1770 = vmatprep.subr.mxu0 %v500
    %1771 = vmatpush1.msra.mxu0 %v499
    %1772 = vmatprep.subr.mxu0 %v496
    %1773 = vmatpush1.msra.mxu0 %v495
    %1774 = vmatprep.subr.mxu0 0.0
    %1775 = vmatpush2.msra.mxu0 0.0
    %1776 = vmatprep.subr.mxu0 0.0
    %1777 = vmatpush2.msra.mxu0 0.0
    %1778 = vmatprep.subr.mxu0 0.0
    %1779 = vmatpush2.msra.mxu0 0.0
    %1780 = vmatprep.subr.mxu0 0.0
    %1781 = vmatpush2.msra.mxu0 0.0
    %1782 = vmatprep.subr.mxu0 0.0
    %1783 = vmatpush2.msra.mxu0 0.0
    %1784 = vmatprep.subr.mxu0 0.0
    %1785 = vmatpush2.msra.mxu0 0.0
    %1786 = vmatprep.subr.mxu0 0.0
    %1787 = vmatpush2.msra.mxu0 0.0
    %1788 = vmatprep.subr.mxu0 0.0
    %1789 = vmatpush2.msra.mxu0 0.0
    %1790 = vmatprep.subr.mxu0 0.0
    %1791 = vmatpush2.msra.mxu0 0.0
    %1792 = vmatprep.subr.mxu0 0.0
    %1793 = vmatpush2.msra.mxu0 0.0
    %1794 = vmatprep.subr.mxu0 0.0
    %1795 = vmatpush2.msra.mxu0 0.0
    %1796 = vmatprep.subr.mxu0 0.0
    %1797 = vmatpush2.msra.mxu0 0.0
    %1798 = vmatprep.subr.mxu0 0.0
    %1799 = vmatpush2.msra.mxu0 0.0
    %1800 = vmatprep.subr.mxu0 0.0
    %1801 = vmatpush2.msra.mxu0 0.0
    %1802 = vmatprep.subr.mxu0 0.0
    %1803 = vmatpush2.msra.mxu0 0.0
    %1804 = vmatprep.subr.mxu0 0.0
    %1805 = vmatpush2.msra.mxu0 0.0
    %1806 = vmatprep.mubr.f32.mxu0 0.0
    %1807 = vmatmul.mubr.f32.gmra.mxu0 %v1736
    %v1808 = vpop.f32.mrf.mxu0
    %v1809 = vadd.f32 0.0, %v1808
    %v1810 = vpop.f32.mrf.mxu0
    %v1811 = vadd.f32 0.0, %v1810
    %1812 = vdwg.mxu0
    %1813 = vmatprep.subr.mxu0 %v558
    %1814 = vmatpush1.msra.mxu0 %v557
    %1815 = vmatprep.subr.mxu0 %v554
    %1816 = vmatpush1.msra.mxu0 %v553
    %1817 = vmatprep.subr.mxu0 %v550
    %1818 = vmatpush1.msra.mxu0 %v549
    %1819 = vmatprep.subr.mxu0 %v546
    %1820 = vmatpush1.msra.mxu0 %v545
    %1821 = vmatprep.subr.mxu0 %v542
    %1822 = vmatpush1.msra.mxu0 %v541
    %1823 = vmatprep.subr.mxu0 %v538
    %1824 = vmatpush1.msra.mxu0 %v537
    %1825 = vmatprep.subr.mxu0 %v534
    %1826 = vmatpush1.msra.mxu0 %v533
    %1827 = vmatprep.subr.mxu0 %v530
    %1828 = vmatpush1.msra.mxu0 %v529
    %1829 = vmatprep.subr.mxu0 %v526
    %1830 = vmatpush1.msra.mxu0 %v525
    %1831 = vmatprep.subr.mxu0 %v522
    %1832 = vmatpush1.msra.mxu0 %v521
    %1833 = vmatprep.subr.mxu0 %v518
    %1834 = vmatpush1.msra.mxu0 %v517
    %1835 = vmatprep.subr.mxu0 %v514
    %1836 = vmatpush1.msra.mxu0 %v513
    %1837 = vmatprep.subr.mxu0 %v510
    %1838 = vmatpush1.msra.mxu0 %v509
    %1839 = vmatprep.subr.mxu0 %v506
    %1840 = vmatpush1.msra.mxu0 %v505
    %1841 = vmatprep.subr.mxu0 %v502
    %1842 = vmatpush1.msra.mxu0 %v501
    %1843 = vmatprep.subr.mxu0 %v498
    %1844 = vmatpush1.msra.mxu0 %v497
    %1845 = vmatprep.subr.mxu0 0.0
    %1846 = vmatpush2.msra.mxu0 0.0
    %1847 = vmatprep.subr.mxu0 0.0
    %1848 = vmatpush2.msra.mxu0 0.0
    %1849 = vmatprep.subr.mxu0 0.0
    %1850 = vmatpush2.msra.mxu0 0.0
    %1851 = vmatprep.subr.mxu0 0.0
    %1852 = vmatpush2.msra.mxu0 0.0
    %1853 = vmatprep.subr.mxu0 0.0
    %1854 = vmatpush2.msra.mxu0 0.0
    %1855 = vmatprep.subr.mxu0 0.0
    %1856 = vmatpush2.msra.mxu0 0.0
    %1857 = vmatprep.subr.mxu0 0.0
    %1858 = vmatpush2.msra.mxu0 0.0
    %1859 = vmatprep.subr.mxu0 0.0
    %1860 = vmatpush2.msra.mxu0 0.0
    %1861 = vmatprep.subr.mxu0 0.0
    %1862 = vmatpush2.msra.mxu0 0.0
    %1863 = vmatprep.subr.mxu0 0.0
    %1864 = vmatpush2.msra.mxu0 0.0
    %1865 = vmatprep.subr.mxu0 0.0
    %1866 = vmatpush2.msra.mxu0 0.0
    %1867 = vmatprep.subr.mxu0 0.0
    %1868 = vmatpush2.msra.mxu0 0.0
    %1869 = vmatprep.subr.mxu0 0.0
    %1870 = vmatpush2.msra.mxu0 0.0
    %1871 = vmatprep.subr.mxu0 0.0
    %1872 = vmatpush2.msra.mxu0 0.0
    %1873 = vmatprep.subr.mxu0 0.0
    %1874 = vmatpush2.msra.mxu0 0.0
    %1875 = vmatprep.subr.mxu0 0.0
    %1876 = vmatpush2.msra.mxu0 0.0
    %1877 = vmatprep.mubr.f32.mxu0 0.0
    %1878 = vmatmul.mubr.f32.gmra.mxu0 %v1736
    %v1879 = vpop.f32.mrf.mxu0
    %v1880 = vadd.f32 0.0, %v1879
    %v1881 = vpop.f32.mrf.mxu0
    %v1882 = vadd.f32 0.0, %v1881
    %1883 = vdwg.mxu0
    %v1884 = vadd.f32 %v1738, %v1809
    %v1885 = vadd.f32 %v1739, %v1811
    %v1886 = vadd.f32 %v1740, %v1880
    %v1887 = vadd.f32 %v1741, %v1882
    %v1888 = vmul.f32 %v1884, 0.5
    %v1889 = vmul.f32 %v1885, 0.5
    %v1890 = vmul.f32 %v1886, 0.5
    %v1891 = vtanh.pop %v1888
    %v1892 = vtanh.pop %v1889
    %v1893 = vtanh.pop %v1890
    %v1894 = vmul.f32 %v1891, 0.5
    %v1895 = vmul.f32 %v1892, 0.5
    %v1896 = vmul.f32 %v1893, 0.5
    %v1897 = vadd.f32 %v1894, 0.5
    %v1898 = vadd.f32 %v1895, 0.5
    %v1899 = vadd.f32 %v1896, 0.5
    %v1900 = vtanh.pop %v1887
    %v1901 = vmul.f32 %v1898, %v1734
    %v1902 = vmul.f32 %v1897, %v1900
    %v1903 = vadd.f32 %v1901, %v1902
    %v1904 = vtanh.pop %v1903
    %v1905 = vmul.f32 %v1899, %v1904
    %v1906 = vld [vmem:[#allocation7] sm:$0xff]
    %v1907 = vld [vmem:[#allocation7 + $0x8] sm:$0xff]
    %v1908 = vld [vmem:[#allocation7 + $0x10] sm:$0xff]
    %v1909 = vld [vmem:[#allocation7 + $0x18] sm:$0xff]
    %v1910 = vld [vmem:[#allocation7 + $0x20] sm:$0xff]
    %v1911 = vld [vmem:[#allocation7 + $0x28] sm:$0xff]
    %v1912 = vld [vmem:[#allocation7 + $0x30] sm:$0xff]
    %v1913 = vld [vmem:[#allocation7 + $0x38] sm:$0xff]
    %v1914 = vld [vmem:[#allocation7 + $0x40] sm:$0xff]
    %v1915 = vld [vmem:[#allocation7 + $0x48] sm:$0xff]
    %v1916 = vld [vmem:[#allocation7 + $0x50] sm:$0xff]
    %v1917 = vld [vmem:[#allocation7 + $0x58] sm:$0xff]
    %v1918 = vld [vmem:[#allocation7 + $0x60] sm:$0xff]
    %v1919 = vld [vmem:[#allocation7 + $0x68] sm:$0xff]
    %v1920 = vld [vmem:[#allocation7 + $0x70] sm:$0xff]
    %v1921 = vld [vmem:[#allocation7 + $0x78] sm:$0xff]
    %v1922 = vld [vmem:[%s5] sm:$0x1]
    %v1924 = vlaneseq
    %v1925 = vshrl.u32 %v1924, 7
    %v1926 = vsub.s32 0, %v1925
    %v1927 = vrot.slane %v1922, %v1926
    %1929 = vmatprep.subr.mxu0 0.0
    %1930 = vmatpush1.msra.mxu0 %v1921
    %1931 = vmatprep.subr.mxu0 0.0
    %1932 = vmatpush1.msra.mxu0 %v1920
    %1933 = vmatprep.subr.mxu0 0.0
    %1934 = vmatpush1.msra.mxu0 %v1919
    %1935 = vmatprep.subr.mxu0 0.0
    %1936 = vmatpush1.msra.mxu0 %v1918
    %1937 = vmatprep.subr.mxu0 0.0
    %1938 = vmatpush1.msra.mxu0 %v1917
    %1939 = vmatprep.subr.mxu0 0.0
    %1940 = vmatpush1.msra.mxu0 %v1916
    %1941 = vmatprep.subr.mxu0 0.0
    %1942 = vmatpush1.msra.mxu0 %v1915
    %1943 = vmatprep.subr.mxu0 0.0
    %1944 = vmatpush1.msra.mxu0 %v1914
    %1945 = vmatprep.subr.mxu0 0.0
    %1946 = vmatpush1.msra.mxu0 %v1913
    %1947 = vmatprep.subr.mxu0 0.0
    %1948 = vmatpush1.msra.mxu0 %v1912
    %1949 = vmatprep.subr.mxu0 0.0
    %1950 = vmatpush1.msra.mxu0 %v1911
    %1951 = vmatprep.subr.mxu0 0.0
    %1952 = vmatpush1.msra.mxu0 %v1910
    %1953 = vmatprep.subr.mxu0 0.0
    %1954 = vmatpush1.msra.mxu0 %v1909
    %1955 = vmatprep.subr.mxu0 0.0
    %1956 = vmatpush1.msra.mxu0 %v1908
    %1957 = vmatprep.subr.mxu0 0.0
    %1958 = vmatpush1.msra.mxu0 %v1907
    %1959 = vmatprep.subr.mxu0 0.0
    %1960 = vmatpush1.msra.mxu0 %v1906
    %1961 = vmatprep.subr.mxu0 0.0
    %1962 = vmatpush2.msra.mxu0 0.0
    %1963 = vmatprep.subr.mxu0 0.0
    %1964 = vmatpush2.msra.mxu0 0.0
    %1965 = vmatprep.subr.mxu0 0.0
    %1966 = vmatpush2.msra.mxu0 0.0
    %1967 = vmatprep.subr.mxu0 0.0
    %1968 = vmatpush2.msra.mxu0 0.0
    %1969 = vmatprep.subr.mxu0 0.0
    %1970 = vmatpush2.msra.mxu0 0.0
    %1971 = vmatprep.subr.mxu0 0.0
    %1972 = vmatpush2.msra.mxu0 0.0
    %1973 = vmatprep.subr.mxu0 0.0
    %1974 = vmatpush2.msra.mxu0 0.0
    %1975 = vmatprep.subr.mxu0 0.0
    %1976 = vmatpush2.msra.mxu0 0.0
    %1977 = vmatprep.subr.mxu0 0.0
    %1978 = vmatpush2.msra.mxu0 0.0
    %1979 = vmatprep.subr.mxu0 0.0
    %1980 = vmatpush2.msra.mxu0 0.0
    %1981 = vmatprep.subr.mxu0 0.0
    %1982 = vmatpush2.msra.mxu0 0.0
    %1983 = vmatprep.subr.mxu0 0.0
    %1984 = vmatpush2.msra.mxu0 0.0
    %1985 = vmatprep.subr.mxu0 0.0
    %1986 = vmatpush2.msra.mxu0 0.0
    %1987 = vmatprep.subr.mxu0 0.0
    %1988 = vmatpush2.msra.mxu0 0.0
    %1989 = vmatprep.subr.mxu0 0.0
    %1990 = vmatpush2.msra.mxu0 0.0
    %1991 = vmatprep.subr.mxu0 0.0
    %1992 = vmatpush2.msra.mxu0 0.0
    %1993 = vmatprep.mubr.f32.mxu0 0.0
    %1994 = vmatmul.mubr.f32.gmra.mxu0 %v1905
    %v1995 = vpop.f32.mrf.mxu0
    %v1996 = vadd.f32 %v1927, %v1995
    %v1997 = vpop.f32.mrf.mxu0
    %1998 = vdwg.mxu0
    %1999 = vst [vmem:[%s6] sm:$0xff] %v1996
    // Predicated region
    $region38: #{lstm_net_forward.1} parent=1 // pred_check
      _
    $region39: #{lstm_net_forward.1} parent=1 // pred_check_branch
      %2001 = sbr.rel (0) target = $region41
    $region40: #{lstm_net_forward.1} parent=1 // pred_region
      _
    $region41: #{lstm_net_forward.1} parent=1 // pred_fallthru
      _
    // Predicated region
    $region42: #{lstm_net_forward.1} parent=1 // pred_check
      _
    $region43: #{lstm_net_forward.1} parent=1 // pred_check_branch
      %2003 = sbr.rel (0) target = $region45
    $region44: #{lstm_net_forward.1} parent=1 // pred_region
      _
    $region45: #{lstm_net_forward.1} parent=1 // pred_fallthru
      _
    %2004 = vsyncpa [#allocation4], 1
    %2005 = vsyncpa [#allocation6], 1

</llo_original>
